<compile_context>
chip_gen: v7x
topology: tpu7x:2x2x1
jax: 0.10.0
libtpu: 0.0.40
codegen_flags: <defaults>
</compile_context>

<pallas_src>
import functools

import numpy as np
import jax
import jax.numpy as jnp
from jax import lax
from jax.experimental import pallas as pl
from jax.experimental.pallas import tpu as pltpu

# ---------------- problem sizes (small, consistent with the module) ----------------
N = 2                  # batch
C_MID = 32             # out_channels of the bottleneck
EXP = 4                # Bottleneck.expansion
C_IN = C_MID * EXP     # in_channels == out_channels*4 -> identity path, no downsample
C_OUT = C_MID * EXP
H = W = 8
HW = H * W
K2 = 9 * C_MID         # im2col contraction size
EPS = 1e-5


# ------------------------------------ kernel ---------------------------------------
def bottleneck_kernel(x_ref, w1_ref, w2_ref, w3_ref,
                      b1_ref, b2_ref, b3_ref, mask_ref, o_ref,
                      *, n_blk, rows):
    """One grid step processes `n_blk` images (rows = n_blk*H*W fused matmul rows)."""
    # ---- conv1 (1x1, BN1 scale pre-folded into w1) + bias + ReLU ----
    a1 = jnp.dot(x_ref[...].reshape(rows, C_IN), w1_ref[...],
                 preferred_element_type=jnp.float32)
    a1 = jnp.maximum(a1 + b1_ref[...], 0.0)                      # (rows, C_MID)

    # ---- conv2 (3x3, stride=1, padding=1, BN2 scale folded) + bias + ReLU ----
    # Value-level im2col: rows are in fused (n, h, w) order; the tap at (dh, dw) is a
    # roll of the row axis by dh*W + dw.  Taps are built UNMASKED (rolls ride the XLU
    # slot); a single full-lane (rows, 9*C_MID) {0,1} mask multiply zeroes every tap
    # whose (h+dh, w+dw) leaves the image, which also kills any cross-image wrap.
    taps = []
    for kh in range(3):
        for kw in range(3):
            s = (kh - 1) * W + (kw - 1)                           # row shift
            taps.append(a1 if s == 0
                        else pltpu.roll(a1, shift=(-s) % rows, axis=0))  # [i] = a1[i+s]
    patches = jnp.concatenate(taps, axis=1) * mask_ref[...]      # (rows, 9*C_MID)
    a2 = jnp.dot(patches, w2_ref[...], preferred_element_type=jnp.float32)
    a2 = jnp.maximum(a2 + b2_ref[...], 0.0)                      # (rows, C_MID)

    # ---- conv3 (1x1, BN3 scale folded) + bias, residual add (identity), ReLU ----
    a3 = jnp.dot(a2, w3_ref[...], preferred_element_type=jnp.float32)
    res = x_ref[...].reshape(rows, C_OUT)                        # re-read residual from VMEM
    out = jnp.maximum(a3 + b3_ref[...] + res, 0.0)               # (rows, C_OUT)
    o_ref[...] = out.reshape(n_blk, H, W, C_OUT).astype(o_ref.dtype)


# ------------------------------- wrapper construction -------------------------------
def _make_conv2_mask(n_blk):
    """Static {0,1} validity mask for the 9 concatenated taps, built once with numpy."""
    rows = n_blk * HW
    r = np.arange(rows)
    hh = (r // W) % H
    ww = r % W
    cols = []
    for kh in range(3):
        for kw in range(3):
            dh, dw = kh - 1, kw - 1
            valid = ((hh + dh >= 0) & (hh + dh < H) &
                     (ww + dw >= 0) & (ww + dw < W))
            cols.append(np.repeat(valid[:, None].astype(np.float32), C_MID, axis=1))
    return jnp.asarray(np.concatenate(cols, axis=1))              # (rows, 9*C_MID)


def _tensorcores_per_chip():
    # v7x has 2 TensorCores/chip -> split the batch across them; on single-TC chips
    # (v5e/v6e) a multi-step grid only adds pipeline overhead, so keep grid=(1,).
    try:
        kind = jax.devices()[0].device_kind.lower()
        if any(tag in kind for tag in ("v7", "7x")):
            return 2
    except Exception:
        pass
    return 1


def build_bottleneck():
    """Build jitted forward functions with a chip-generation-gated grid."""
    n_tc = _tensorcores_per_chip()
    if n_tc >= 2 and N % n_tc == 0:
        n_blk, grid_n, sem = 1, N, ("parallel",)     # one image per TC on v7x
    else:
        n_blk, grid_n, sem = N, 1, ("arbitrary",)    # single step on v5e/v6e
    rows = n_blk * HW
    mask = _make_conv2_mask(n_blk)                   # baked in as a jit constant

    kern = functools.partial(bottleneck_kernel, n_blk=n_blk, rows=rows)
    const = lambda shape: pl.BlockSpec(shape, lambda i: (0,) * len(shape))

    call = pl.pallas_call(
        kern,
        out_shape=jax.ShapeDtypeStruct((N, H, W, C_OUT), jnp.float32),
        grid_spec=pltpu.PrefetchScalarGridSpec(
            num_scalar_prefetch=0,
            grid=(grid_n,),
            in_specs=[
                pl.BlockSpec((n_blk, H, W, C_IN), lambda i: (i, 0, 0, 0)),   # x
                const((C_IN, C_MID)),                                        # w1*s1
                const((K2, C_MID)),                                          # w2*s2 (im2col)
                const((C_MID, C_OUT)),                                       # w3*s3
                const((1, C_MID)),                                           # b1
                const((1, C_MID)),                                           # b2
                const((1, C_OUT)),                                           # b3
                const((rows, K2)),                                           # conv2 tap mask
            ],
            out_specs=pl.BlockSpec((n_blk, H, W, C_OUT), lambda i: (i, 0, 0, 0)),
        ),
        compiler_params=pltpu.CompilerParams(dimension_semantics=sem),
    )

    # Preferred entry point: NHWC end-to-end, no transposes in the hot path,
    # lane-dense (C=128) output layout preserved.
    @jax.jit
    def forward_nhwc(x_nhwc, folded):
        w1s, w2s, w3s, b1, b2, b3 = folded
        return call(x_nhwc, w1s, w2s, w3s, b1, b2, b3, mask)

    # NCHW adapter matching the PyTorch module interface; jitted so the edge
    # transposes fuse with surrounding ops instead of dispatching separately.
    @jax.jit
    def forward_nchw(x_nchw, folded):
        x_nhwc = jnp.transpose(x_nchw, (0, 2, 3, 1))
        out_nhwc = forward_nhwc(x_nhwc, folded)
        return jnp.transpose(out_nhwc, (0, 3, 1, 2))

    return forward_nchw, forward_nhwc


# ----------------------------------- parameters -------------------------------------
def make_params(key):
    """Deterministic synthetic raw parameters (conv weights HWIO-style, BN stats)."""
    ks = jax.random.split(key, 4)
    w1 = jax.random.normal(ks[0], (C_IN, C_MID), jnp.float32) * 0.05
    w2 = jax.random.normal(ks[1], (3, 3, C_MID, C_MID), jnp.float32) * 0.05
    w3 = jax.random.normal(ks[2], (C_MID, C_OUT), jnp.float32) * 0.05

    def bn_fold(kg, kb, km, kv, c):
        gamma = 1.0 + 0.1 * jax.random.normal(kg, (c,), jnp.float32)
        beta = 0.1 * jax.random.normal(kb, (c,), jnp.float32)
        mean = 0.1 * jax.random.normal(km, (c,), jnp.float32)
        var = jnp.abs(jax.random.normal(kv, (c,), jnp.float32)) + 0.5
        scale = gamma / jnp.sqrt(var + EPS)
        bias = beta - mean * scale
        return scale.reshape(1, c), bias.reshape(1, c)

    kb = jax.random.split(ks[3], 12)
    s1, b1 = bn_fold(kb[0], kb[1], kb[2], kb[3], C_MID)
    s2, b2 = bn_fold(kb[4], kb[5], kb[6], kb[7], C_MID)
    s3, b3 = bn_fold(kb[8], kb[9], kb[10], kb[11], C_OUT)
    return (w1, w2, w3, s1, b1, s2, b2, s3, b3)


def fold_params(params):
    """BN-scale fold + im2col weight reshape, done ONCE at init (off the hot path).
    (x @ w) * s + b == x @ (w * s) + b."""
    (w1, w2, w3, s1, b1, s2, b2, s3, b3) = params
    w1s = w1 * s1                                                  # (C_IN, C_MID)
    w2s = (w2 * s2.reshape(1, 1, 1, C_MID)).reshape(K2, C_MID)     # im2col weight layout
    w3s = w3 * s3                                                  # (C_MID, C_OUT)
    return tuple(jax.device_put(a) for a in (w1s, w2s, w3s, b1, b2, b3))


# ------------------------------------ reference --------------------------------------
@jax.jit
def reference_forward(x_nchw, params):
    """Pure-JAX reference of the same (inference-mode BN) bottleneck."""
    (w1, w2, w3, s1, b1, s2, b2, s3, b3) = params
    x = jnp.transpose(x_nchw, (0, 2, 3, 1))
    dn = ("NHWC", "HWIO", "NHWC")
    a1 = lax.conv_general_dilated(x, w1.reshape(1, 1, C_IN, C_MID), (1, 1),
                                  "VALID", dimension_numbers=dn)
    a1 = jnp.maximum(a1 * s1 + b1, 0.0)
    a2 = lax.conv_general_dilated(a1, w2, (1, 1), "SAME", dimension_numbers=dn)
    a2 = jnp.maximum(a2 * s2 + b2, 0.0)
    a3 = lax.conv_general_dilated(a2, w3.reshape(1, 1, C_MID, C_OUT), (1, 1),
                                  "VALID", dimension_numbers=dn)
    out = jnp.maximum(a3 * s3 + b3 + x, 0.0)
    return jnp.transpose(out, (0, 3, 1, 2))


# -------------------------------------- main ------------------------------------------
if __name__ == "__main__":
    key = jax.random.PRNGKey(0)
    kx, kp = jax.random.split(key)
    x_nchw = jax.random.normal(kx, (N, C_IN, H, W), jnp.float32)
    params = make_params(kp)
    folded = fold_params(params)                     # BN-fold hoisted out of the forward

    forward_nchw, forward_nhwc = build_bottleneck()

    out = jax.block_until_ready(forward_nchw(x_nchw, folded))
    ref = jax.block_until_ready(reference_forward(x_nchw, params))
    assert out.shape == (N, C_OUT, H, W)
    np.testing.assert_allclose(np.asarray(out), np.asarray(ref), rtol=1e-4, atol=1e-4)

    # NHWC-native path (preferred inside an NHWC model): identical numbers, no transposes.
    out_nhwc = jax.block_until_ready(
        forward_nhwc(jnp.transpose(x_nchw, (0, 2, 3, 1)), folded))
    np.testing.assert_allclose(
        np.asarray(jnp.transpose(out_nhwc, (0, 3, 1, 2))), np.asarray(ref),
        rtol=1e-4, atol=1e-4)

    # TODO(synk): BatchNorm is implemented in inference mode (folded running stats);
    # training-mode batch-statistics update is not expressed in this kernel.
    print("KERNEL_OK")
</pallas_src>

<mosaic_0001>
module attributes {stable_mosaic.version = 11 : i64} {
  func.func @bottleneck_kernel(%arg0: i32, %arg1: memref<2x8x8x128xf32, #tpu.memory_space<vmem>>, %arg2: memref<128x32xf32, #tpu.memory_space<vmem>>, %arg3: memref<288x32xf32, #tpu.memory_space<vmem>>, %arg4: memref<32x128xf32, #tpu.memory_space<vmem>>, %arg5: memref<1x32xf32, #tpu.memory_space<vmem>>, %arg6: memref<1x32xf32, #tpu.memory_space<vmem>>, %arg7: memref<1x128xf32, #tpu.memory_space<vmem>>, %arg8: memref<128x288xf32, #tpu.memory_space<vmem>>, %arg9: memref<2x8x8x128xf32, #tpu.memory_space<vmem>>) attributes {dimension_semantics = [#tpu.dimension_semantics<arbitrary>], iteration_bounds = array<i64: 1>, scalar_prefetch = 0 : i64, scratch_operands = 0 : i64, tpu.core_type = #tpu.core_type<tc>, window_params = [{transform_indices = @transform_0, window_bounds = array<i64: 2, 8, 8, 128>}, {pipeline_mode = #tpu.pipeline_mode<synchronous>, transform_indices = @transform_1, window_bounds = array<i64: 128, 32>}, {pipeline_mode = #tpu.pipeline_mode<synchronous>, transform_indices = @transform_2, window_bounds = array<i64: 288, 32>}, {pipeline_mode = #tpu.pipeline_mode<synchronous>, transform_indices = @transform_3, window_bounds = array<i64: 32, 128>}, {pipeline_mode = #tpu.pipeline_mode<synchronous>, transform_indices = @transform_4, window_bounds = array<i64: 1, 32>}, {pipeline_mode = #tpu.pipeline_mode<synchronous>, transform_indices = @transform_5, window_bounds = array<i64: 1, 32>}, {pipeline_mode = #tpu.pipeline_mode<synchronous>, transform_indices = @transform_6, window_bounds = array<i64: 1, 128>}, {pipeline_mode = #tpu.pipeline_mode<synchronous>, transform_indices = @transform_7, window_bounds = array<i64: 128, 288>}, {transform_indices = @transform_8, window_bounds = array<i64: 2, 8, 8, 128>}]} {
    %c0 = arith.constant 0 : index
    %c0_0 = arith.constant 0 : index
    %c0_1 = arith.constant 0 : index
    %c0_2 = arith.constant 0 : index
    %0 = vector.load %arg1[%c0, %c0_0, %c0_1, %c0_2] : memref<2x8x8x128xf32, #tpu.memory_space<vmem>>, vector<2x8x8x128xf32>
    %1 = vector.shape_cast %0 : vector<2x8x8x128xf32> to vector<128x128xf32>
    %c0_3 = arith.constant 0 : index
    %c0_4 = arith.constant 0 : index
    %2 = vector.load %arg2[%c0_3, %c0_4] : memref<128x32xf32, #tpu.memory_space<vmem>>, vector<128x32xf32>
    %cst = arith.constant dense<0.000000e+00> : vector<128x32xf32>
    %3 = tpu.matmul %1, %2, %cst {dimension_numbers = #tpu.dot_dimension_numbers<[1], [0], [0], [1], [0, 0, 1, 1], [], []>} : vector<128x128xf32>, vector<128x32xf32>, vector<128x32xf32> -> vector<128x32xf32>
    %c0_5 = arith.constant 0 : index
    %c0_6 = arith.constant 0 : index
    %4 = vector.load %arg5[%c0_5, %c0_6] : memref<1x32xf32, #tpu.memory_space<vmem>>, vector<1x32xf32>
    %5 = vector.broadcast %4 : vector<1x32xf32> to vector<128x32xf32>
    %6 = arith.addf %3, %5 : vector<128x32xf32>
    %cst_7 = arith.constant 0.000000e+00 : f32
    %7 = vector.broadcast %cst_7 : f32 to vector<128x32xf32>
    %8 = arith.maximumf %6, %7 : vector<128x32xf32>
    %c9_i32 = arith.constant 9 : i32
    %9 = tpu.dynamic_rotate %8 by %c9_i32 dim 0 : vector<128x32xf32>, i32 -> vector<128x32xf32>
    %c8_i32 = arith.constant 8 : i32
    %10 = tpu.dynamic_rotate %8 by %c8_i32 dim 0 : vector<128x32xf32>, i32 -> vector<128x32xf32>
    %c7_i32 = arith.constant 7 : i32
    %11 = tpu.dynamic_rotate %8 by %c7_i32 dim 0 : vector<128x32xf32>, i32 -> vector<128x32xf32>
    %c1_i32 = arith.constant 1 : i32
    %12 = tpu.dynamic_rotate %8 by %c1_i32 dim 0 : vector<128x32xf32>, i32 -> vector<128x32xf32>
    %c127_i32 = arith.constant 127 : i32
    %13 = tpu.dynamic_rotate %8 by %c127_i32 dim 0 : vector<128x32xf32>, i32 -> vector<128x32xf32>
    %c121_i32 = arith.constant 121 : i32
    %14 = tpu.dynamic_rotate %8 by %c121_i32 dim 0 : vector<128x32xf32>, i32 -> vector<128x32xf32>
    %c120_i32 = arith.constant 120 : i32
    %15 = tpu.dynamic_rotate %8 by %c120_i32 dim 0 : vector<128x32xf32>, i32 -> vector<128x32xf32>
    %c119_i32 = arith.constant 119 : i32
    %16 = tpu.dynamic_rotate %8 by %c119_i32 dim 0 : vector<128x32xf32>, i32 -> vector<128x32xf32>
    %17 = tpu.concatenate %9, %10, %11, %12, %8, %13, %14, %15, %16 in 1 : vector<128x32xf32>, vector<128x32xf32>, vector<128x32xf32>, vector<128x32xf32>, vector<128x32xf32>, vector<128x32xf32>, vector<128x32xf32>, vector<128x32xf32>, vector<128x32xf32> -> vector<128x288xf32>
    %c0_8 = arith.constant 0 : index
    %c0_9 = arith.constant 0 : index
    %18 = vector.load %arg8[%c0_8, %c0_9] : memref<128x288xf32, #tpu.memory_space<vmem>>, vector<128x288xf32>
    %19 = arith.mulf %17, %18 : vector<128x288xf32>
    %c0_10 = arith.constant 0 : index
    %c0_11 = arith.constant 0 : index
    %20 = vector.load %arg3[%c0_10, %c0_11] : memref<288x32xf32, #tpu.memory_space<vmem>>, vector<288x32xf32>
    %cst_12 = arith.constant dense<0.000000e+00> : vector<128x32xf32>
    %21 = tpu.matmul %19, %20, %cst_12 {dimension_numbers = #tpu.dot_dimension_numbers<[1], [0], [0], [1], [0, 0, 1, 1], [], []>} : vector<128x288xf32>, vector<288x32xf32>, vector<128x32xf32> -> vector<128x32xf32>
    %c0_13 = arith.constant 0 : index
    %c0_14 = arith.constant 0 : index
    %22 = vector.load %arg6[%c0_13, %c0_14] : memref<1x32xf32, #tpu.memory_space<vmem>>, vector<1x32xf32>
    %23 = vector.broadcast %22 : vector<1x32xf32> to vector<128x32xf32>
    %24 = arith.addf %21, %23 : vector<128x32xf32>
    %cst_15 = arith.constant 0.000000e+00 : f32
    %25 = vector.broadcast %cst_15 : f32 to vector<128x32xf32>
    %26 = arith.maximumf %24, %25 : vector<128x32xf32>
    %c0_16 = arith.constant 0 : index
    %c0_17 = arith.constant 0 : index
    %27 = vector.load %arg4[%c0_16, %c0_17] : memref<32x128xf32, #tpu.memory_space<vmem>>, vector<32x128xf32>
    %cst_18 = arith.constant dense<0.000000e+00> : vector<128x128xf32>
    %28 = tpu.matmul %26, %27, %cst_18 {dimension_numbers = #tpu.dot_dimension_numbers<[1], [0], [0], [1], [0, 0, 1, 1], [], []>} : vector<128x32xf32>, vector<32x128xf32>, vector<128x128xf32> -> vector<128x128xf32>
    %c0_19 = arith.constant 0 : index
    %c0_20 = arith.constant 0 : index
    %c0_21 = arith.constant 0 : index
    %c0_22 = arith.constant 0 : index
    %29 = vector.load %arg1[%c0_19, %c0_20, %c0_21, %c0_22] : memref<2x8x8x128xf32, #tpu.memory_space<vmem>>, vector<2x8x8x128xf32>
    %30 = vector.shape_cast %29 : vector<2x8x8x128xf32> to vector<128x128xf32>
    %c0_23 = arith.constant 0 : index
    %c0_24 = arith.constant 0 : index
    %31 = vector.load %arg7[%c0_23, %c0_24] : memref<1x128xf32, #tpu.memory_space<vmem>>, vector<1x128xf32>
    %32 = vector.broadcast %31 : vector<1x128xf32> to vector<128x128xf32>
    %33 = arith.addf %28, %32 : vector<128x128xf32>
    %34 = arith.addf %33, %30 : vector<128x128xf32>
    %cst_25 = arith.constant 0.000000e+00 : f32
    %35 = vector.broadcast %cst_25 : f32 to vector<128x128xf32>
    %36 = arith.maximumf %34, %35 : vector<128x128xf32>
    %37 = vector.shape_cast %36 : vector<128x128xf32> to vector<2x8x8x128xf32>
    %c0_26 = arith.constant 0 : index
    %c0_27 = arith.constant 0 : index
    %c0_28 = arith.constant 0 : index
    %c0_29 = arith.constant 0 : index
    %38 = vector.load %arg9[%c0_26, %c0_27, %c0_28, %c0_29] : memref<2x8x8x128xf32, #tpu.memory_space<vmem>>, vector<2x8x8x128xf32>
    tpu.vector_store %arg9[%c0_26, %c0_27, %c0_28, %c0_29], %37 {strides = array<i32>} : memref<2x8x8x128xf32, #tpu.memory_space<vmem>>, vector<2x8x8x128xf32>,
    return
  }
  func.func @transform_0(%arg0: i32) -> (i32, i32, i32, i32) {
    %c0_i32 = arith.constant 0 : i32
    %c0_i32_0 = arith.constant 0 : i32
    %c0_i32_1 = arith.constant 0 : i32
    %c0_i32_2 = arith.constant 0 : i32
    return %arg0, %c0_i32, %c0_i32_0, %c0_i32_1 : i32, i32, i32, i32
  }
  func.func @transform_1(%arg0: i32) -> (i32, i32) {
    %c0_i32 = arith.constant 0 : i32
    %c0_i32_0 = arith.constant 0 : i32
    %c0_i32_1 = arith.constant 0 : i32
    return %c0_i32, %c0_i32_0 : i32, i32
  }
  func.func @transform_2(%arg0: i32) -> (i32, i32) {
    %c0_i32 = arith.constant 0 : i32
    %c0_i32_0 = arith.constant 0 : i32
    %c0_i32_1 = arith.constant 0 : i32
    return %c0_i32, %c0_i32_0 : i32, i32
  }
  func.func @transform_3(%arg0: i32) -> (i32, i32) {
    %c0_i32 = arith.constant 0 : i32
    %c0_i32_0 = arith.constant 0 : i32
    %c0_i32_1 = arith.constant 0 : i32
    return %c0_i32, %c0_i32_0 : i32, i32
  }
  func.func @transform_4(%arg0: i32) -> (i32, i32) {
    %c0_i32 = arith.constant 0 : i32
    %c0_i32_0 = arith.constant 0 : i32
    %c0_i32_1 = arith.constant 0 : i32
    return %c0_i32, %c0_i32_0 : i32, i32
  }
  func.func @transform_5(%arg0: i32) -> (i32, i32) {
    %c0_i32 = arith.constant 0 : i32
    %c0_i32_0 = arith.constant 0 : i32
    %c0_i32_1 = arith.constant 0 : i32
    return %c0_i32, %c0_i32_0 : i32, i32
  }
  func.func @transform_6(%arg0: i32) -> (i32, i32) {
    %c0_i32 = arith.constant 0 : i32
    %c0_i32_0 = arith.constant 0 : i32
    %c0_i32_1 = arith.constant 0 : i32
    return %c0_i32, %c0_i32_0 : i32, i32
  }
  func.func @transform_7(%arg0: i32) -> (i32, i32) {
    %c0_i32 = arith.constant 0 : i32
    %c0_i32_0 = arith.constant 0 : i32
    %c0_i32_1 = arith.constant 0 : i32
    return %c0_i32, %c0_i32_0 : i32, i32
  }
  func.func @transform_8(%arg0: i32) -> (i32, i32, i32, i32) {
    %c0_i32 = arith.constant 0 : i32
    %c0_i32_0 = arith.constant 0 : i32
    %c0_i32_1 = arith.constant 0 : i32
    %c0_i32_2 = arith.constant 0 : i32
    return %arg0, %c0_i32, %c0_i32_0, %c0_i32_1 : i32, i32, i32, i32
  }
}

</mosaic_0001>

<llo_original>
// kernel: forward_nhwc.1
$region0: #{forward_nhwc.1}
  #allocation0 [shape = 'u32[]', space=smem, size = 0x4, offset = 0x4, fixed_abs, tag = 'smem constant byte address 0x4 - core index']
  #allocation1 [shape = 'u32[144,128]{1,0:T(1,128)}', space=vmem, size = 0x12000, scoped, tag = 'internal scratch']
  %s0 = inlined_call_operand.vmem [shape: f32[2,8,8,128], index: 0, kind: input, shape index: {}]
  %s1 = inlined_call_operand.vmem [shape: f32[128,32], index: 1, kind: input, shape index: {}]
  %s2 = inlined_call_operand.vmem [shape: f32[288,32], index: 2, kind: input, shape index: {}]
  %s3 = inlined_call_operand.vmem [shape: f32[32,128], index: 3, kind: input, shape index: {}]
  %s4 = inlined_call_operand.vmem [shape: f32[1,32], index: 4, kind: input, shape index: {}]
  %s5 = inlined_call_operand.vmem [shape: f32[1,32], index: 5, kind: input, shape index: {}]
  %s6 = inlined_call_operand.vmem [shape: f32[1,128], index: 6, kind: input, shape index: {}]
  %s7 = inlined_call_operand.vmem [shape: f32[128,288], index: 7, kind: input, shape index: {}]
  %s8 = inlined_call_operand.hbm [shape: f32[2,8,8,128], index: 8, kind: output, shape index: {}]
  %s9 = sld [smem:[#allocation0]]
  $region42: #{forward_nhwc.1} parent=0
    _
  %s11 = ssub.s32 1, %s9
  %s12 = scalar_select 0, %s11, %s9
  $region1: #{forward_nhwc.1} parent=0
    #allocation2 [shape = 'u8[65536]{0}', space=vmem, size = 0x10000, scoped, tag = 'output window, operand 0, single buffered']
    #allocation3 [shape = 's32[1]{0}', space=sflag, size = 0x4, scoped, tag = 'scoped memory for forward_nhwc.1']
    %13 = vsyncpa [#allocation3], 0
    // Predicated region
    $region2: #{forward_nhwc.1} parent=1 // pred_check
      _
    $region3: #{forward_nhwc.1} parent=1 // pred_check_branch
      %15 = sbr.rel (0) target = $region5
    $region4: #{forward_nhwc.1} parent=1 // pred_region
      _
    $region5: #{forward_nhwc.1} parent=1 // pred_fallthru
      _
    // Predicated region
    $region6: #{forward_nhwc.1} parent=1 // pred_check
      _
    $region7: #{forward_nhwc.1} parent=1 // pred_check_branch
      %17 = sbr.rel (0) target = $region9
    $region8: #{forward_nhwc.1} parent=1 // pred_region
      _
    $region9: #{forward_nhwc.1} parent=1 // pred_fallthru
      _
    // Predicated region
    $region10: #{forward_nhwc.1} parent=1 // pred_check
      _
    $region11: #{forward_nhwc.1} parent=1 // pred_check_branch
      %19 = sbr.rel (0) target = $region13
    $region12: #{forward_nhwc.1} parent=1 // pred_region
      _
    $region13: #{forward_nhwc.1} parent=1 // pred_fallthru
      _
    // Predicated region
    $region14: #{forward_nhwc.1} parent=1 // pred_check
      _
    $region15: #{forward_nhwc.1} parent=1 // pred_check_branch
      %21 = sbr.rel (0) target = $region17
    $region16: #{forward_nhwc.1} parent=1 // pred_region
      _
    $region17: #{forward_nhwc.1} parent=1 // pred_fallthru
      _
    // Predicated region
    $region18: #{forward_nhwc.1} parent=1 // pred_check
      _
    $region19: #{forward_nhwc.1} parent=1 // pred_check_branch
      %23 = sbr.rel (0) target = $region21
    $region20: #{forward_nhwc.1} parent=1 // pred_region
      _
    $region21: #{forward_nhwc.1} parent=1 // pred_fallthru
      _
    // Predicated region
    $region22: #{forward_nhwc.1} parent=1 // pred_check
      _
    $region23: #{forward_nhwc.1} parent=1 // pred_check_branch
      %25 = sbr.rel (0) target = $region25
    $region24: #{forward_nhwc.1} parent=1 // pred_region
      _
    $region25: #{forward_nhwc.1} parent=1 // pred_fallthru
      _
    // Predicated region
    $region26: #{forward_nhwc.1} parent=1 // pred_check
      _
    $region27: #{forward_nhwc.1} parent=1 // pred_check_branch
      %27 = sbr.rel (0) target = $region29
    $region28: #{forward_nhwc.1} parent=1 // pred_region
      _
    $region29: #{forward_nhwc.1} parent=1 // pred_fallthru
      _
    // Predicated region
    $region30: #{forward_nhwc.1} parent=1 // pred_check
      _
    $region31: #{forward_nhwc.1} parent=1 // pred_check_branch
      %29 = sbr.rel (0) target = $region33
    $region32: #{forward_nhwc.1} parent=1 // pred_region
      _
    $region33: #{forward_nhwc.1} parent=1 // pred_fallthru
      _
    %v30 = vld [vmem:[%s0] sm:$0xff]
    %v31 = vld [vmem:[%s0 + $0x8] sm:$0xff]
    %v32 = vld [vmem:[%s0 + $0x10] sm:$0xff]
    %v33 = vld [vmem:[%s0 + $0x18] sm:$0xff]
    %v34 = vld [vmem:[%s0 + $0x20] sm:$0xff]
    %v35 = vld [vmem:[%s0 + $0x28] sm:$0xff]
    %v36 = vld [vmem:[%s0 + $0x30] sm:$0xff]
    %v37 = vld [vmem:[%s0 + $0x38] sm:$0xff]
    %v38 = vld [vmem:[%s0 + $0x40] sm:$0xff]
    %v39 = vld [vmem:[%s0 + $0x48] sm:$0xff]
    %v40 = vld [vmem:[%s0 + $0x50] sm:$0xff]
    %v41 = vld [vmem:[%s0 + $0x58] sm:$0xff]
    %v42 = vld [vmem:[%s0 + $0x60] sm:$0xff]
    %v43 = vld [vmem:[%s0 + $0x68] sm:$0xff]
    %v44 = vld [vmem:[%s0 + $0x70] sm:$0xff]
    %v45 = vld [vmem:[%s0 + $0x78] sm:$0xff]
    %v46 = vld [vmem:[%s1] sm:$0xff]
    %v47 = vld [vmem:[%s1 + $0x8] sm:$0xff]
    %v48 = vld [vmem:[%s1 + $0x10] sm:$0xff]
    %v49 = vld [vmem:[%s1 + $0x18] sm:$0xff]
    %v50 = vld [vmem:[%s1 + $0x20] sm:$0xff]
    %v51 = vld [vmem:[%s1 + $0x28] sm:$0xff]
    %v52 = vld [vmem:[%s1 + $0x30] sm:$0xff]
    %v53 = vld [vmem:[%s1 + $0x38] sm:$0xff]
    %v54 = vld [vmem:[%s1 + $0x40] sm:$0xff]
    %v55 = vld [vmem:[%s1 + $0x48] sm:$0xff]
    %v56 = vld [vmem:[%s1 + $0x50] sm:$0xff]
    %v57 = vld [vmem:[%s1 + $0x58] sm:$0xff]
    %v58 = vld [vmem:[%s1 + $0x60] sm:$0xff]
    %v59 = vld [vmem:[%s1 + $0x68] sm:$0xff]
    %v60 = vld [vmem:[%s1 + $0x70] sm:$0xff]
    %v61 = vld [vmem:[%s1 + $0x78] sm:$0xff]
    %v62 = vld [vmem:[%s4] sm:$0x1]
    %v64 = vlaneseq
    %v65 = vshrl.u32 %v64, 7
    %v66 = vsub.s32 0, %v65
    %v67 = vrot.slane %v62, %v66
    %69 = vmatprep.subr.mxu0 0.0
    %70 = vmatpush1.msra.mxu0 %v46
    %71 = vmatprep.subr.mxu0 0.0
    %72 = vmatpush1.msra.mxu0 %v47
    %73 = vmatprep.subr.mxu0 0.0
    %74 = vmatpush1.msra.mxu0 %v48
    %75 = vmatprep.subr.mxu0 0.0
    %76 = vmatpush1.msra.mxu0 %v49
    %77 = vmatprep.subr.mxu0 0.0
    %78 = vmatpush1.msra.mxu0 %v50
    %79 = vmatprep.subr.mxu0 0.0
    %80 = vmatpush1.msra.mxu0 %v51
    %81 = vmatprep.subr.mxu0 0.0
    %82 = vmatpush1.msra.mxu0 %v52
    %83 = vmatprep.subr.mxu0 0.0
    %84 = vmatpush1.msra.mxu0 %v53
    %85 = vmatprep.subr.mxu0 0.0
    %86 = vmatpush1.msra.mxu0 %v54
    %87 = vmatprep.subr.mxu0 0.0
    %88 = vmatpush1.msra.mxu0 %v55
    %89 = vmatprep.subr.mxu0 0.0
    %90 = vmatpush1.msra.mxu0 %v56
    %91 = vmatprep.subr.mxu0 0.0
    %92 = vmatpush1.msra.mxu0 %v57
    %93 = vmatprep.subr.mxu0 0.0
    %94 = vmatpush1.msra.mxu0 %v58
    %95 = vmatprep.subr.mxu0 0.0
    %96 = vmatpush1.msra.mxu0 %v59
    %97 = vmatprep.subr.mxu0 0.0
    %98 = vmatpush1.msra.mxu0 %v60
    %99 = vmatprep.subr.mxu0 0.0
    %100 = vmatpush1.msra.mxu0 %v61
    %101 = vmatprep.subr.mxu0 0.0
    %102 = vmatpush1.msra.mxu0 0.0
    %103 = vmatprep.subr.mxu0 0.0
    %104 = vmatpush1.msra.mxu0 0.0
    %105 = vmatprep.subr.mxu0 0.0
    %106 = vmatpush1.msra.mxu0 0.0
    %107 = vmatprep.subr.mxu0 0.0
    %108 = vmatpush1.msra.mxu0 0.0
    %109 = vmatprep.subr.mxu0 0.0
    %110 = vmatpush1.msra.mxu0 0.0
    %111 = vmatprep.subr.mxu0 0.0
    %112 = vmatpush1.msra.mxu0 0.0
    %113 = vmatprep.subr.mxu0 0.0
    %114 = vmatpush1.msra.mxu0 0.0
    %115 = vmatprep.subr.mxu0 0.0
    %116 = vmatpush1.msra.mxu0 0.0
    %117 = vmatprep.subr.mxu0 0.0
    %118 = vmatpush1.msra.mxu0 0.0
    %119 = vmatprep.subr.mxu0 0.0
    %120 = vmatpush1.msra.mxu0 0.0
    %121 = vmatprep.subr.mxu0 0.0
    %122 = vmatpush1.msra.mxu0 0.0
    %123 = vmatprep.subr.mxu0 0.0
    %124 = vmatpush1.msra.mxu0 0.0
    %125 = vmatprep.subr.mxu0 0.0
    %126 = vmatpush1.msra.mxu0 0.0
    %127 = vmatprep.subr.mxu0 0.0
    %128 = vmatpush1.msra.mxu0 0.0
    %129 = vmatprep.subr.mxu0 0.0
    %130 = vmatpush1.msra.mxu0 0.0
    %131 = vmatprep.subr.mxu0 0.0
    %132 = vmatpush1.msra.mxu0 0.0
    %133 = vmatprep.mubr.f32.mxu0 0.0
    %134 = vmatmul.mubr.f32.gmra.mrb[0].mxu0 %v30
    %v135 = vpop.f32.mrb[0].mxu0
    %v136 = vadd.f32 %v67, %v135
    %v137 = vpop.f32.mrb[0].mxu0
    %138 = vmatprep.mubr.f32.mxu0 0.0
    %139 = vmatmul.mubr.f32.gmra.mrb[0].mxu0 %v31
    %v140 = vpop.f32.mrb[0].mxu0
    %v141 = vadd.f32 %v67, %v140
    %v142 = vpop.f32.mrb[0].mxu0
    %143 = vmatprep.mubr.f32.mxu0 0.0
    %144 = vmatmul.mubr.f32.gmra.mrb[0].mxu0 %v32
    %v145 = vpop.f32.mrb[0].mxu0
    %v146 = vadd.f32 %v67, %v145
    %v147 = vpop.f32.mrb[0].mxu0
    %148 = vmatprep.mubr.f32.mxu0 0.0
    %149 = vmatmul.mubr.f32.gmra.mrb[0].mxu0 %v33
    %v150 = vpop.f32.mrb[0].mxu0
    %v151 = vadd.f32 %v67, %v150
    %v152 = vpop.f32.mrb[0].mxu0
    %153 = vmatprep.mubr.f32.mxu0 0.0
    %154 = vmatmul.mubr.f32.gmra.mrb[0].mxu0 %v34
    %v155 = vpop.f32.mrb[0].mxu0
    %v156 = vadd.f32 %v67, %v155
    %v157 = vpop.f32.mrb[0].mxu0
    %158 = vmatprep.mubr.f32.mxu0 0.0
    %159 = vmatmul.mubr.f32.gmra.mrb[0].mxu0 %v35
    %v160 = vpop.f32.mrb[0].mxu0
    %v161 = vadd.f32 %v67, %v160
    %v162 = vpop.f32.mrb[0].mxu0
    %163 = vmatprep.mubr.f32.mxu0 0.0
    %164 = vmatmul.mubr.f32.gmra.mrb[0].mxu0 %v36
    %v165 = vpop.f32.mrb[0].mxu0
    %v166 = vadd.f32 %v67, %v165
    %v167 = vpop.f32.mrb[0].mxu0
    %168 = vmatprep.mubr.f32.mxu0 0.0
    %169 = vmatmul.mubr.f32.gmra.mrb[0].mxu0 %v37
    %v170 = vpop.f32.mrb[0].mxu0
    %v171 = vadd.f32 %v67, %v170
    %v172 = vpop.f32.mrb[0].mxu0
    %173 = vmatprep.mubr.f32.mxu0 0.0
    %174 = vmatmul.mubr.f32.gmra.mrb[0].mxu0 %v38
    %v175 = vpop.f32.mrb[0].mxu0
    %v176 = vadd.f32 %v67, %v175
    %v177 = vpop.f32.mrb[0].mxu0
    %178 = vmatprep.mubr.f32.mxu0 0.0
    %179 = vmatmul.mubr.f32.gmra.mrb[0].mxu0 %v39
    %v180 = vpop.f32.mrb[0].mxu0
    %v181 = vadd.f32 %v67, %v180
    %v182 = vpop.f32.mrb[0].mxu0
    %183 = vmatprep.mubr.f32.mxu0 0.0
    %184 = vmatmul.mubr.f32.gmra.mrb[0].mxu0 %v40
    %v185 = vpop.f32.mrb[0].mxu0
    %v186 = vadd.f32 %v67, %v185
    %v187 = vpop.f32.mrb[0].mxu0
    %188 = vmatprep.mubr.f32.mxu0 0.0
    %189 = vmatmul.mubr.f32.gmra.mrb[0].mxu0 %v41
    %v190 = vpop.f32.mrb[0].mxu0
    %v191 = vadd.f32 %v67, %v190
    %v192 = vpop.f32.mrb[0].mxu0
    %193 = vmatprep.mubr.f32.mxu0 0.0
    %194 = vmatmul.mubr.f32.gmra.mrb[0].mxu0 %v42
    %v195 = vpop.f32.mrb[0].mxu0
    %v196 = vadd.f32 %v67, %v195
    %v197 = vpop.f32.mrb[0].mxu0
    %198 = vmatprep.mubr.f32.mxu0 0.0
    %199 = vmatmul.mubr.f32.gmra.mrb[0].mxu0 %v43
    %v200 = vpop.f32.mrb[0].mxu0
    %v201 = vadd.f32 %v67, %v200
    %v202 = vpop.f32.mrb[0].mxu0
    %203 = vmatprep.mubr.f32.mxu0 0.0
    %204 = vmatmul.mubr.f32.gmra.mrb[0].mxu0 %v44
    %v205 = vpop.f32.mrb[0].mxu0
    %v206 = vadd.f32 %v67, %v205
    %v207 = vpop.f32.mrb[0].mxu0
    %208 = vmatprep.mubr.f32.mxu0 0.0
    %209 = vmatmul.mubr.f32.gmra.mrb[0].mxu0 %v45
    %v210 = vpop.f32.mrb[0].mxu0
    %v211 = vadd.f32 %v67, %v210
    %v212 = vpop.f32.mrb[0].mxu0
    %213 = vdwg.mxu0
    %v214 = vmax.f32 %v136, 0.0
    %v215 = vmax.f32 %v141, 0.0
    %v216 = vmax.f32 %v146, 0.0
    %v217 = vmax.f32 %v151, 0.0
    %v218 = vmax.f32 %v156, 0.0
    %v219 = vmax.f32 %v161, 0.0
    %v220 = vmax.f32 %v166, 0.0
    %v221 = vmax.f32 %v171, 0.0
    %v222 = vmax.f32 %v176, 0.0
    %v223 = vmax.f32 %v181, 0.0
    %v224 = vmax.f32 %v186, 0.0
    %v225 = vmax.f32 %v191, 0.0
    %v226 = vmax.f32 %v196, 0.0
    %v227 = vmax.f32 %v201, 0.0
    %v228 = vmax.f32 %v206, 0.0
    %v229 = vmax.f32 %v211, 0.0
    %v230 = vrot.slane %v214, 7
    %v231 = vrot.slane %v215, 7
    %v232 = vrot.slane %v216, 7
    %v233 = vrot.slane %v217, 7
    %v234 = vrot.slane %v218, 7
    %v235 = vrot.slane %v219, 7
    %v236 = vrot.slane %v220, 7
    %v237 = vrot.slane %v221, 7
    %v238 = vrot.slane %v222, 7
    %v239 = vrot.slane %v223, 7
    %v240 = vrot.slane %v224, 7
    %v241 = vrot.slane %v225, 7
    %v242 = vrot.slane %v226, 7
    %v243 = vrot.slane %v227, 7
    %v244 = vrot.slane %v228, 7
    %v245 = vrot.slane %v229, 7
    %v246 = vlaneseq
    %v247 = vshrl.u32 %v246, 7
    %vm248 = vcmp.lt.s32.totalorder %v247, 1
    %v249 = vsel %vm248, %v244, %v245
    %v250 = vsel %vm248, %v243, %v244
    %v251 = vsel %vm248, %v242, %v243
    %v252 = vsel %vm248, %v241, %v242
    %v253 = vsel %vm248, %v240, %v241
    %v254 = vsel %vm248, %v239, %v240
    %v255 = vsel %vm248, %v238, %v239
    %v256 = vsel %vm248, %v237, %v238
    %v257 = vsel %vm248, %v236, %v237
    %v258 = vsel %vm248, %v235, %v236
    %v259 = vsel %vm248, %v234, %v235
    %v260 = vsel %vm248, %v233, %v234
    %v261 = vsel %vm248, %v232, %v233
    %v262 = vsel %vm248, %v231, %v232
    %v263 = vsel %vm248, %v230, %v231
    %v264 = vsel %vm248, %v245, %v230
    %v265 = vrot.slane %v214, 1
    %v266 = vrot.slane %v215, 1
    %v267 = vrot.slane %v216, 1
    %v268 = vrot.slane %v217, 1
    %v269 = vrot.slane %v218, 1
    %v270 = vrot.slane %v219, 1
    %v271 = vrot.slane %v220, 1
    %v272 = vrot.slane %v221, 1
    %v273 = vrot.slane %v222, 1
    %v274 = vrot.slane %v223, 1
    %v275 = vrot.slane %v224, 1
    %v276 = vrot.slane %v225, 1
    %v277 = vrot.slane %v226, 1
    %v278 = vrot.slane %v227, 1
    %v279 = vrot.slane %v228, 1
    %v280 = vrot.slane %v229, 1
    %vm281 = vcmp.lt.s32.totalorder %v247, 7
    %v282 = vsel %vm281, %v279, %v280
    %v283 = vsel %vm281, %v278, %v279
    %v284 = vsel %vm281, %v277, %v278
    %v285 = vsel %vm281, %v276, %v277
    %v286 = vsel %vm281, %v275, %v276
    %v287 = vsel %vm281, %v274, %v275
    %v288 = vsel %vm281, %v273, %v274
    %v289 = vsel %vm281, %v272, %v273
    %v290 = vsel %vm281, %v271, %v272
    %v291 = vsel %vm281, %v270, %v271
    %v292 = vsel %vm281, %v269, %v270
    %v293 = vsel %vm281, %v268, %v269
    %v294 = vsel %vm281, %v267, %v268
    %v295 = vsel %vm281, %v266, %v267
    %v296 = vsel %vm281, %v265, %v266
    %v297 = vsel %vm281, %v280, %v265
    %314 = vrot.lane.b32.xlu0 %v229, 32
    %v315 = vpop.permute.xlu0 %314
    %316 = vrot.lane.b32.xlu0 %v214, 32
    %v317 = vpop.permute.xlu0 %316
    %318 = vrot.lane.b32.xlu0 %v215, 32
    %v319 = vpop.permute.xlu0 %318
    %320 = vrot.lane.b32.xlu0 %v216, 32
    %v321 = vpop.permute.xlu0 %320
    %322 = vrot.lane.b32.xlu0 %v217, 32
    %v323 = vpop.permute.xlu0 %322
    %324 = vrot.lane.b32.xlu0 %v218, 32
    %v325 = vpop.permute.xlu0 %324
    %326 = vrot.lane.b32.xlu0 %v219, 32
    %v327 = vpop.permute.xlu0 %326
    %328 = vrot.lane.b32.xlu0 %v220, 32
    %v329 = vpop.permute.xlu0 %328
    %330 = vrot.lane.b32.xlu0 %v221, 32
    %v331 = vpop.permute.xlu0 %330
    %332 = vrot.lane.b32.xlu0 %v222, 32
    %v333 = vpop.permute.xlu0 %332
    %334 = vrot.lane.b32.xlu0 %v223, 32
    %v335 = vpop.permute.xlu0 %334
    %336 = vrot.lane.b32.xlu0 %v224, 32
    %v337 = vpop.permute.xlu0 %336
    %338 = vrot.lane.b32.xlu0 %v225, 32
    %v339 = vpop.permute.xlu0 %338
    %340 = vrot.lane.b32.xlu0 %v226, 32
    %v341 = vpop.permute.xlu0 %340
    %342 = vrot.lane.b32.xlu0 %v227, 32
    %v343 = vpop.permute.xlu0 %342
    %344 = vrot.lane.b32.xlu0 %v228, 32
    %v345 = vpop.permute.xlu0 %344
    %378 = vrot.lane.b32.xlu0 %v297, 64
    %v379 = vpop.permute.xlu0 %378
    %380 = vrot.lane.b32.xlu0 %v296, 64
    %v381 = vpop.permute.xlu0 %380
    %382 = vrot.lane.b32.xlu0 %v295, 64
    %v383 = vpop.permute.xlu0 %382
    %384 = vrot.lane.b32.xlu0 %v294, 64
    %v385 = vpop.permute.xlu0 %384
    %386 = vrot.lane.b32.xlu0 %v293, 64
    %v387 = vpop.permute.xlu0 %386
    %388 = vrot.lane.b32.xlu0 %v292, 64
    %v389 = vpop.permute.xlu0 %388
    %390 = vrot.lane.b32.xlu0 %v291, 64
    %v391 = vpop.permute.xlu0 %390
    %392 = vrot.lane.b32.xlu0 %v290, 64
    %v393 = vpop.permute.xlu0 %392
    %394 = vrot.lane.b32.xlu0 %v289, 64
    %v395 = vpop.permute.xlu0 %394
    %396 = vrot.lane.b32.xlu0 %v288, 64
    %v397 = vpop.permute.xlu0 %396
    %398 = vrot.lane.b32.xlu0 %v287, 64
    %v399 = vpop.permute.xlu0 %398
    %400 = vrot.lane.b32.xlu0 %v286, 64
    %v401 = vpop.permute.xlu0 %400
    %402 = vrot.lane.b32.xlu0 %v285, 64
    %v403 = vpop.permute.xlu0 %402
    %404 = vrot.lane.b32.xlu0 %v284, 64
    %v405 = vpop.permute.xlu0 %404
    %406 = vrot.lane.b32.xlu0 %v283, 64
    %v407 = vpop.permute.xlu0 %406
    %408 = vrot.lane.b32.xlu0 %v282, 64
    %v409 = vpop.permute.xlu0 %408
    %442 = vrot.lane.b32.xlu0 %v264, 96
    %v443 = vpop.permute.xlu0 %442
    %444 = vrot.lane.b32.xlu0 %v263, 96
    %v445 = vpop.permute.xlu0 %444
    %446 = vrot.lane.b32.xlu0 %v262, 96
    %v447 = vpop.permute.xlu0 %446
    %448 = vrot.lane.b32.xlu0 %v261, 96
    %v449 = vpop.permute.xlu0 %448
    %450 = vrot.lane.b32.xlu0 %v260, 96
    %v451 = vpop.permute.xlu0 %450
    %452 = vrot.lane.b32.xlu0 %v259, 96
    %v453 = vpop.permute.xlu0 %452
    %454 = vrot.lane.b32.xlu0 %v258, 96
    %v455 = vpop.permute.xlu0 %454
    %456 = vrot.lane.b32.xlu0 %v257, 96
    %v457 = vpop.permute.xlu0 %456
    %458 = vrot.lane.b32.xlu0 %v256, 96
    %v459 = vpop.permute.xlu0 %458
    %460 = vrot.lane.b32.xlu0 %v255, 96
    %v461 = vpop.permute.xlu0 %460
    %462 = vrot.lane.b32.xlu0 %v254, 96
    %v463 = vpop.permute.xlu0 %462
    %464 = vrot.lane.b32.xlu0 %v253, 96
    %v465 = vpop.permute.xlu0 %464
    %466 = vrot.lane.b32.xlu0 %v252, 96
    %v467 = vpop.permute.xlu0 %466
    %468 = vrot.lane.b32.xlu0 %v251, 96
    %v469 = vpop.permute.xlu0 %468
    %470 = vrot.lane.b32.xlu0 %v250, 96
    %v471 = vpop.permute.xlu0 %470
    %472 = vrot.lane.b32.xlu0 %v249, 96
    %v473 = vpop.permute.xlu0 %472
    %490 = vrot.lane.b32.xlu0 %v296, 32
    %v491 = vpop.permute.xlu0 %490
    %492 = vrot.lane.b32.xlu0 %v295, 32
    %v493 = vpop.permute.xlu0 %492
    %494 = vrot.lane.b32.xlu0 %v294, 32
    %v495 = vpop.permute.xlu0 %494
    %496 = vrot.lane.b32.xlu0 %v293, 32
    %v497 = vpop.permute.xlu0 %496
    %498 = vrot.lane.b32.xlu0 %v292, 32
    %v499 = vpop.permute.xlu0 %498
    %500 = vrot.lane.b32.xlu0 %v291, 32
    %v501 = vpop.permute.xlu0 %500
    %502 = vrot.lane.b32.xlu0 %v290, 32
    %v503 = vpop.permute.xlu0 %502
    %504 = vrot.lane.b32.xlu0 %v289, 32
    %v505 = vpop.permute.xlu0 %504
    %506 = vrot.lane.b32.xlu0 %v288, 32
    %v507 = vpop.permute.xlu0 %506
    %508 = vrot.lane.b32.xlu0 %v287, 32
    %v509 = vpop.permute.xlu0 %508
    %510 = vrot.lane.b32.xlu0 %v286, 32
    %v511 = vpop.permute.xlu0 %510
    %512 = vrot.lane.b32.xlu0 %v285, 32
    %v513 = vpop.permute.xlu0 %512
    %514 = vrot.lane.b32.xlu0 %v284, 32
    %v515 = vpop.permute.xlu0 %514
    %516 = vrot.lane.b32.xlu0 %v283, 32
    %v517 = vpop.permute.xlu0 %516
    %518 = vrot.lane.b32.xlu0 %v282, 32
    %v519 = vpop.permute.xlu0 %518
    %520 = vrot.lane.b32.xlu0 %v297, 32
    %v521 = vpop.permute.xlu0 %520
    %538 = vrot.lane.b32.xlu0 %v263, 64
    %v539 = vpop.permute.xlu0 %538
    %540 = vrot.lane.b32.xlu0 %v262, 64
    %v541 = vpop.permute.xlu0 %540
    %542 = vrot.lane.b32.xlu0 %v261, 64
    %v543 = vpop.permute.xlu0 %542
    %544 = vrot.lane.b32.xlu0 %v260, 64
    %v545 = vpop.permute.xlu0 %544
    %546 = vrot.lane.b32.xlu0 %v259, 64
    %v547 = vpop.permute.xlu0 %546
    %548 = vrot.lane.b32.xlu0 %v258, 64
    %v549 = vpop.permute.xlu0 %548
    %550 = vrot.lane.b32.xlu0 %v257, 64
    %v551 = vpop.permute.xlu0 %550
    %552 = vrot.lane.b32.xlu0 %v256, 64
    %v553 = vpop.permute.xlu0 %552
    %554 = vrot.lane.b32.xlu0 %v255, 64
    %v555 = vpop.permute.xlu0 %554
    %556 = vrot.lane.b32.xlu0 %v254, 64
    %v557 = vpop.permute.xlu0 %556
    %558 = vrot.lane.b32.xlu0 %v253, 64
    %v559 = vpop.permute.xlu0 %558
    %560 = vrot.lane.b32.xlu0 %v252, 64
    %v561 = vpop.permute.xlu0 %560
    %562 = vrot.lane.b32.xlu0 %v251, 64
    %v563 = vpop.permute.xlu0 %562
    %564 = vrot.lane.b32.xlu0 %v250, 64
    %v565 = vpop.permute.xlu0 %564
    %566 = vrot.lane.b32.xlu0 %v249, 64
    %v567 = vpop.permute.xlu0 %566
    %568 = vrot.lane.b32.xlu0 %v264, 64
    %v569 = vpop.permute.xlu0 %568
    %586 = vrot.lane.b32.xlu0 %v215, 96
    %v587 = vpop.permute.xlu0 %586
    %588 = vrot.lane.b32.xlu0 %v216, 96
    %v589 = vpop.permute.xlu0 %588
    %590 = vrot.lane.b32.xlu0 %v217, 96
    %v591 = vpop.permute.xlu0 %590
    %592 = vrot.lane.b32.xlu0 %v218, 96
    %v593 = vpop.permute.xlu0 %592
    %594 = vrot.lane.b32.xlu0 %v219, 96
    %v595 = vpop.permute.xlu0 %594
    %596 = vrot.lane.b32.xlu0 %v220, 96
    %v597 = vpop.permute.xlu0 %596
    %598 = vrot.lane.b32.xlu0 %v221, 96
    %v599 = vpop.permute.xlu0 %598
    %600 = vrot.lane.b32.xlu0 %v222, 96
    %v601 = vpop.permute.xlu0 %600
    %602 = vrot.lane.b32.xlu0 %v223, 96
    %v603 = vpop.permute.xlu0 %602
    %604 = vrot.lane.b32.xlu0 %v224, 96
    %v605 = vpop.permute.xlu0 %604
    %606 = vrot.lane.b32.xlu0 %v225, 96
    %v607 = vpop.permute.xlu0 %606
    %608 = vrot.lane.b32.xlu0 %v226, 96
    %v609 = vpop.permute.xlu0 %608
    %610 = vrot.lane.b32.xlu0 %v227, 96
    %v611 = vpop.permute.xlu0 %610
    %612 = vrot.lane.b32.xlu0 %v228, 96
    %v613 = vpop.permute.xlu0 %612
    %614 = vrot.lane.b32.xlu0 %v229, 96
    %v615 = vpop.permute.xlu0 %614
    %616 = vrot.lane.b32.xlu0 %v214, 96
    %v617 = vpop.permute.xlu0 %616
    %vm634 = vcmask 261120
    %v635 = vsel %vm634, %v249, %v315
    %v636 = vsel %vm634, %v264, %v317
    %v637 = vsel %vm634, %v263, %v319
    %v638 = vsel %vm634, %v262, %v321
    %v639 = vsel %vm634, %v261, %v323
    %v640 = vsel %vm634, %v260, %v325
    %v641 = vsel %vm634, %v259, %v327
    %v642 = vsel %vm634, %v258, %v329
    %v643 = vsel %vm634, %v257, %v331
    %v644 = vsel %vm634, %v256, %v333
    %v645 = vsel %vm634, %v255, %v335
    %v646 = vsel %vm634, %v254, %v337
    %v647 = vsel %vm634, %v253, %v339
    %v648 = vsel %vm634, %v252, %v341
    %v649 = vsel %vm634, %v251, %v343
    %v650 = vsel %vm634, %v250, %v345
    %vm651 = vcmask 523264
    %v652 = vsel %vm651, %v635, %v379
    %v653 = vsel %vm651, %v636, %v381
    %v654 = vsel %vm651, %v637, %v383
    %v655 = vsel %vm651, %v638, %v385
    %v656 = vsel %vm651, %v639, %v387
    %v657 = vsel %vm651, %v640, %v389
    %v658 = vsel %vm651, %v641, %v391
    %v659 = vsel %vm651, %v642, %v393
    %v660 = vsel %vm651, %v643, %v395
    %v661 = vsel %vm651, %v644, %v397
    %v662 = vsel %vm651, %v645, %v399
    %v663 = vsel %vm651, %v646, %v401
    %v664 = vsel %vm651, %v647, %v403
    %v665 = vsel %vm651, %v648, %v405
    %v666 = vsel %vm651, %v649, %v407
    %v667 = vsel %vm651, %v650, %v409
    %vm668 = vcmask 785408
    %v669 = vsel %vm668, %v652, %v443
    %v670 = vsel %vm668, %v653, %v445
    %v671 = vsel %vm668, %v654, %v447
    %v672 = vsel %vm668, %v655, %v449
    %v673 = vsel %vm668, %v656, %v451
    %v674 = vsel %vm668, %v657, %v453
    %v675 = vsel %vm668, %v658, %v455
    %v676 = vsel %vm668, %v659, %v457
    %v677 = vsel %vm668, %v660, %v459
    %v678 = vsel %vm668, %v661, %v461
    %v679 = vsel %vm668, %v662, %v463
    %v680 = vsel %vm668, %v663, %v465
    %v681 = vsel %vm668, %v664, %v467
    %v682 = vsel %vm668, %v665, %v469
    %v683 = vsel %vm668, %v666, %v471
    %v684 = vsel %vm668, %v667, %v473
    %v685 = vsel %vm634, %v214, %v491
    %v686 = vsel %vm634, %v215, %v493
    %v687 = vsel %vm634, %v216, %v495
    %v688 = vsel %vm634, %v217, %v497
    %v689 = vsel %vm634, %v218, %v499
    %v690 = vsel %vm634, %v219, %v501
    %v691 = vsel %vm634, %v220, %v503
    %v692 = vsel %vm634, %v221, %v505
    %v693 = vsel %vm634, %v222, %v507
    %v694 = vsel %vm634, %v223, %v509
    %v695 = vsel %vm634, %v224, %v511
    %v696 = vsel %vm634, %v225, %v513
    %v697 = vsel %vm634, %v226, %v515
    %v698 = vsel %vm634, %v227, %v517
    %v699 = vsel %vm634, %v228, %v519
    %v700 = vsel %vm634, %v229, %v521
    %v701 = vsel %vm651, %v685, %v539
    %v702 = vsel %vm651, %v686, %v541
    %v703 = vsel %vm651, %v687, %v543
    %v704 = vsel %vm651, %v688, %v545
    %v705 = vsel %vm651, %v689, %v547
    %v706 = vsel %vm651, %v690, %v549
    %v707 = vsel %vm651, %v691, %v551
    %v708 = vsel %vm651, %v692, %v553
    %v709 = vsel %vm651, %v693, %v555
    %v710 = vsel %vm651, %v694, %v557
    %v711 = vsel %vm651, %v695, %v559
    %v712 = vsel %vm651, %v696, %v561
    %v713 = vsel %vm651, %v697, %v563
    %v714 = vsel %vm651, %v698, %v565
    %v715 = vsel %vm651, %v699, %v567
    %v716 = vsel %vm651, %v700, %v569
    %v717 = vsel %vm668, %v701, %v587
    %v718 = vsel %vm668, %v702, %v589
    %v719 = vsel %vm668, %v703, %v591
    %v720 = vsel %vm668, %v704, %v593
    %v721 = vsel %vm668, %v705, %v595
    %v722 = vsel %vm668, %v706, %v597
    %v723 = vsel %vm668, %v707, %v599
    %v724 = vsel %vm668, %v708, %v601
    %v725 = vsel %vm668, %v709, %v603
    %v726 = vsel %vm668, %v710, %v605
    %v727 = vsel %vm668, %v711, %v607
    %v728 = vsel %vm668, %v712, %v609
    %v729 = vsel %vm668, %v713, %v611
    %v730 = vsel %vm668, %v714, %v613
    %v731 = vsel %vm668, %v715, %v615
    %v732 = vsel %vm668, %v716, %v617
    %v733 = vld [vmem:[%s7] sm:$0xff]
    %v734 = vld [vmem:[%s7 + $0x8] sm:$0xff]
    %v735 = vld [vmem:[%s7 + $0x10] sm:$0xff]
    %v736 = vld [vmem:[%s7 + $0x18] sm:$0xff]
    %v737 = vld [vmem:[%s7 + $0x20] sm:$0xff]
    %v738 = vld [vmem:[%s7 + $0x28] sm:$0xff]
    %v739 = vld [vmem:[%s7 + $0x30] sm:$0xff]
    %v740 = vld [vmem:[%s7 + $0x38] sm:$0xff]
    %v741 = vld [vmem:[%s7 + $0x40] sm:$0xff]
    %v742 = vld [vmem:[%s7 + $0x48] sm:$0xff]
    %v743 = vld [vmem:[%s7 + $0x50] sm:$0xff]
    %v744 = vld [vmem:[%s7 + $0x58] sm:$0xff]
    %v745 = vld [vmem:[%s7 + $0x60] sm:$0xff]
    %v746 = vld [vmem:[%s7 + $0x68] sm:$0xff]
    %v747 = vld [vmem:[%s7 + $0x70] sm:$0xff]
    %v748 = vld [vmem:[%s7 + $0x78] sm:$0xff]
    %v749 = vld [vmem:[%s7 + $0x80] sm:$0xff]
    %v750 = vld [vmem:[%s7 + $0x88] sm:$0xff]
    %v751 = vld [vmem:[%s7 + $0x90] sm:$0xff]
    %v752 = vld [vmem:[%s7 + $0x98] sm:$0xff]
    %v753 = vld [vmem:[%s7 + $0xa0] sm:$0xff]
    %v754 = vld [vmem:[%s7 + $0xa8] sm:$0xff]
    %v755 = vld [vmem:[%s7 + $0xb0] sm:$0xff]
    %v756 = vld [vmem:[%s7 + $0xb8] sm:$0xff]
    %v757 = vld [vmem:[%s7 + $0xc0] sm:$0xff]
    %v758 = vld [vmem:[%s7 + $0xc8] sm:$0xff]
    %v759 = vld [vmem:[%s7 + $0xd0] sm:$0xff]
    %v760 = vld [vmem:[%s7 + $0xd8] sm:$0xff]
    %v761 = vld [vmem:[%s7 + $0xe0] sm:$0xff]
    %v762 = vld [vmem:[%s7 + $0xe8] sm:$0xff]
    %v763 = vld [vmem:[%s7 + $0xf0] sm:$0xff]
    %v764 = vld [vmem:[%s7 + $0xf8] sm:$0xff]
    %v765 = vld [vmem:[%s7 + $0x100] sm:$0xff]
    %v766 = vld [vmem:[%s7 + $0x108] sm:$0xff]
    %v767 = vld [vmem:[%s7 + $0x110] sm:$0xff]
    %v768 = vld [vmem:[%s7 + $0x118] sm:$0xff]
    %v769 = vld [vmem:[%s7 + $0x120] sm:$0xff]
    %v770 = vld [vmem:[%s7 + $0x128] sm:$0xff]
    %v771 = vld [vmem:[%s7 + $0x130] sm:$0xff]
    %v772 = vld [vmem:[%s7 + $0x138] sm:$0xff]
    %v773 = vld [vmem:[%s7 + $0x140] sm:$0xff]
    %v774 = vld [vmem:[%s7 + $0x148] sm:$0xff]
    %v775 = vld [vmem:[%s7 + $0x150] sm:$0xff]
    %v776 = vld [vmem:[%s7 + $0x158] sm:$0xff]
    %v777 = vld [vmem:[%s7 + $0x160] sm:$0xff]
    %v778 = vld [vmem:[%s7 + $0x168] sm:$0xff]
    %v779 = vld [vmem:[%s7 + $0x170] sm:$0xff]
    %v780 = vld [vmem:[%s7 + $0x178] sm:$0xff]
    %v781 = vmul.f32 %v669, %v733
    %v782 = vmul.f32 %v717, %v734
    %v783 = vmul.f32 %v295, %v735
    %v784 = vmul.f32 %v670, %v736
    %v785 = vmul.f32 %v718, %v737
    %v786 = vmul.f32 %v294, %v738
    %v787 = vmul.f32 %v671, %v739
    %v788 = vmul.f32 %v719, %v740
    %v789 = vmul.f32 %v293, %v741
    %v790 = vmul.f32 %v672, %v742
    %v791 = vmul.f32 %v720, %v743
    %v792 = vmul.f32 %v292, %v744
    %v793 = vmul.f32 %v673, %v745
    %v794 = vmul.f32 %v721, %v746
    %v795 = vmul.f32 %v291, %v747
    %v796 = vmul.f32 %v674, %v748
    %v797 = vmul.f32 %v722, %v749
    %v798 = vmul.f32 %v290, %v750
    %v799 = vmul.f32 %v675, %v751
    %v800 = vmul.f32 %v723, %v752
    %v801 = vmul.f32 %v289, %v753
    %v802 = vmul.f32 %v676, %v754
    %v803 = vmul.f32 %v724, %v755
    %v804 = vmul.f32 %v288, %v756
    %v805 = vmul.f32 %v677, %v757
    %v806 = vmul.f32 %v725, %v758
    %v807 = vmul.f32 %v287, %v759
    %v808 = vmul.f32 %v678, %v760
    %v809 = vmul.f32 %v726, %v761
    %v810 = vmul.f32 %v286, %v762
    %v811 = vmul.f32 %v679, %v763
    %v812 = vmul.f32 %v727, %v764
    %v813 = vmul.f32 %v285, %v765
    %v814 = vmul.f32 %v680, %v766
    %v815 = vmul.f32 %v728, %v767
    %v816 = vmul.f32 %v284, %v768
    %v817 = vmul.f32 %v681, %v769
    %v818 = vmul.f32 %v729, %v770
    %v819 = vmul.f32 %v283, %v771
    %v820 = vmul.f32 %v682, %v772
    %v821 = vmul.f32 %v730, %v773
    %v822 = vmul.f32 %v282, %v774
    %v823 = vmul.f32 %v683, %v775
    %v824 = vmul.f32 %v731, %v776
    %v825 = vmul.f32 %v297, %v777
    %v826 = vmul.f32 %v684, %v778
    %v827 = vmul.f32 %v732, %v779
    %v828 = vmul.f32 %v296, %v780
    %v829 = vld [vmem:[%s2] sm:$0xff]
    %v830 = vld [vmem:[%s2 + $0x8] sm:$0xff]
    %v831 = vld [vmem:[%s2 + $0x10] sm:$0xff]
    %v832 = vld [vmem:[%s2 + $0x18] sm:$0xff]
    %v833 = vld [vmem:[%s2 + $0x20] sm:$0xff]
    %v834 = vld [vmem:[%s2 + $0x28] sm:$0xff]
    %v835 = vld [vmem:[%s2 + $0x30] sm:$0xff]
    %v836 = vld [vmem:[%s2 + $0x38] sm:$0xff]
    %v837 = vld [vmem:[%s2 + $0x40] sm:$0xff]
    %v838 = vld [vmem:[%s2 + $0x48] sm:$0xff]
    %v839 = vld [vmem:[%s2 + $0x50] sm:$0xff]
    %v840 = vld [vmem:[%s2 + $0x58] sm:$0xff]
    %v841 = vld [vmem:[%s2 + $0x60] sm:$0xff]
    %v842 = vld [vmem:[%s2 + $0x68] sm:$0xff]
    %v843 = vld [vmem:[%s2 + $0x70] sm:$0xff]
    %v844 = vld [vmem:[%s2 + $0x78] sm:$0xff]
    %v845 = vld [vmem:[%s2 + $0x80] sm:$0xff]
    %v846 = vld [vmem:[%s2 + $0x88] sm:$0xff]
    %v847 = vld [vmem:[%s2 + $0x90] sm:$0xff]
    %v848 = vld [vmem:[%s2 + $0x98] sm:$0xff]
    %v849 = vld [vmem:[%s2 + $0xa0] sm:$0xff]
    %v850 = vld [vmem:[%s2 + $0xa8] sm:$0xff]
    %v851 = vld [vmem:[%s2 + $0xb0] sm:$0xff]
    %v852 = vld [vmem:[%s2 + $0xb8] sm:$0xff]
    %v853 = vld [vmem:[%s2 + $0xc0] sm:$0xff]
    %v854 = vld [vmem:[%s2 + $0xc8] sm:$0xff]
    %v855 = vld [vmem:[%s2 + $0xd0] sm:$0xff]
    %v856 = vld [vmem:[%s2 + $0xd8] sm:$0xff]
    %v857 = vld [vmem:[%s2 + $0xe0] sm:$0xff]
    %v858 = vld [vmem:[%s2 + $0xe8] sm:$0xff]
    %v859 = vld [vmem:[%s2 + $0xf0] sm:$0xff]
    %v860 = vld [vmem:[%s2 + $0xf8] sm:$0xff]
    %v861 = vld [vmem:[%s2 + $0x100] sm:$0xff]
    %v862 = vld [vmem:[%s2 + $0x108] sm:$0xff]
    %v863 = vld [vmem:[%s2 + $0x110] sm:$0xff]
    %v864 = vld [vmem:[%s2 + $0x118] sm:$0xff]
    %v865 = vld [vmem:[%s5] sm:$0x1]
    %v867 = vlaneseq
    %v868 = vshrl.u32 %v867, 7
    %v869 = vsub.s32 0, %v868
    %v870 = vrot.slane %v865, %v869
    %v873 = vsel %vm634, %v783, 0
    %v876 = vsel %vm634, %v786, 0
    %v879 = vsel %vm634, %v789, 0
    %v882 = vsel %vm634, %v792, 0
    %v885 = vsel %vm634, %v795, 0
    %v888 = vsel %vm634, %v798, 0
    %v891 = vsel %vm634, %v801, 0
    %v894 = vsel %vm634, %v804, 0
    %v897 = vsel %vm634, %v807, 0
    %v900 = vsel %vm634, %v810, 0
    %v903 = vsel %vm634, %v813, 0
    %v906 = vsel %vm634, %v816, 0
    %v909 = vsel %vm634, %v819, 0
    %v912 = vsel %vm634, %v822, 0
    %v915 = vsel %vm634, %v825, 0
    %v918 = vsel %vm634, %v828, 0
    %920 = vmatprep.subr.mxu0 0.0
    %921 = vmatpush1.msra.mxu0 %v829
    %922 = vmatprep.subr.mxu0 0.0
    %923 = vmatpush1.msra.mxu0 %v830
    %924 = vmatprep.subr.mxu0 0.0
    %925 = vmatpush1.msra.mxu0 %v831
    %926 = vmatprep.subr.mxu0 0.0
    %927 = vmatpush1.msra.mxu0 %v832
    %928 = vmatprep.subr.mxu0 0.0
    %929 = vmatpush1.msra.mxu0 %v833
    %930 = vmatprep.subr.mxu0 0.0
    %931 = vmatpush1.msra.mxu0 %v834
    %932 = vmatprep.subr.mxu0 0.0
    %933 = vmatpush1.msra.mxu0 %v835
    %934 = vmatprep.subr.mxu0 0.0
    %935 = vmatpush1.msra.mxu0 %v836
    %936 = vmatprep.subr.mxu0 0.0
    %937 = vmatpush1.msra.mxu0 %v837
    %938 = vmatprep.subr.mxu0 0.0
    %939 = vmatpush1.msra.mxu0 %v838
    %940 = vmatprep.subr.mxu0 0.0
    %941 = vmatpush1.msra.mxu0 %v839
    %942 = vmatprep.subr.mxu0 0.0
    %943 = vmatpush1.msra.mxu0 %v840
    %944 = vmatprep.subr.mxu0 0.0
    %945 = vmatpush1.msra.mxu0 %v841
    %946 = vmatprep.subr.mxu0 0.0
    %947 = vmatpush1.msra.mxu0 %v842
    %948 = vmatprep.subr.mxu0 0.0
    %949 = vmatpush1.msra.mxu0 %v843
    %950 = vmatprep.subr.mxu0 0.0
    %951 = vmatpush1.msra.mxu0 %v844
    %952 = vmatprep.subr.mxu0 0.0
    %953 = vmatpush1.msra.mxu0 %v845
    %954 = vmatprep.subr.mxu0 0.0
    %955 = vmatpush1.msra.mxu0 %v846
    %956 = vmatprep.subr.mxu0 0.0
    %957 = vmatpush1.msra.mxu0 %v847
    %958 = vmatprep.subr.mxu0 0.0
    %959 = vmatpush1.msra.mxu0 %v848
    %960 = vmatprep.subr.mxu0 0.0
    %961 = vmatpush1.msra.mxu0 %v849
    %962 = vmatprep.subr.mxu0 0.0
    %963 = vmatpush1.msra.mxu0 %v850
    %964 = vmatprep.subr.mxu0 0.0
    %965 = vmatpush1.msra.mxu0 %v851
    %966 = vmatprep.subr.mxu0 0.0
    %967 = vmatpush1.msra.mxu0 %v852
    %968 = vmatprep.subr.mxu0 0.0
    %969 = vmatpush1.msra.mxu0 %v853
    %970 = vmatprep.subr.mxu0 0.0
    %971 = vmatpush1.msra.mxu0 %v854
    %972 = vmatprep.subr.mxu0 0.0
    %973 = vmatpush1.msra.mxu0 %v855
    %974 = vmatprep.subr.mxu0 0.0
    %975 = vmatpush1.msra.mxu0 %v856
    %976 = vmatprep.subr.mxu0 0.0
    %977 = vmatpush1.msra.mxu0 %v857
    %978 = vmatprep.subr.mxu0 0.0
    %979 = vmatpush1.msra.mxu0 %v858
    %980 = vmatprep.subr.mxu0 0.0
    %981 = vmatpush1.msra.mxu0 %v859
    %982 = vmatprep.subr.mxu0 0.0
    %983 = vmatpush1.msra.mxu0 %v860
    %984 = vmatprep.mubr.f32.mxu0 %v782
    %985 = vmatmul.mubr.f32.gmra.mrb[0].mxu0 %v781
    %v986 = vpop.f32.mrb[0].mxu0
    %v987 = vadd.f32 %v870, %v986
    %v988 = vpop.f32.mrb[0].mxu0
    %989 = vmatprep.mubr.f32.mxu0 %v785
    %990 = vmatmul.mubr.f32.gmra.mrb[0].mxu0 %v784
    %v991 = vpop.f32.mrb[0].mxu0
    %v992 = vadd.f32 %v870, %v991
    %v993 = vpop.f32.mrb[0].mxu0
    %994 = vmatprep.mubr.f32.mxu0 %v788
    %995 = vmatmul.mubr.f32.gmra.mrb[0].mxu0 %v787
    %v996 = vpop.f32.mrb[0].mxu0
    %v997 = vadd.f32 %v870, %v996
    %v998 = vpop.f32.mrb[0].mxu0
    %999 = vmatprep.mubr.f32.mxu0 %v791
    %1000 = vmatmul.mubr.f32.gmra.mrb[0].mxu0 %v790
    %v1001 = vpop.f32.mrb[0].mxu0
    %v1002 = vadd.f32 %v870, %v1001
    %v1003 = vpop.f32.mrb[0].mxu0
    %1004 = vmatprep.mubr.f32.mxu0 %v794
    %1005 = vmatmul.mubr.f32.gmra.mrb[0].mxu0 %v793
    %v1006 = vpop.f32.mrb[0].mxu0
    %v1007 = vadd.f32 %v870, %v1006
    %v1008 = vpop.f32.mrb[0].mxu0
    %1009 = vmatprep.mubr.f32.mxu0 %v797
    %1010 = vmatmul.mubr.f32.gmra.mrb[0].mxu0 %v796
    %v1011 = vpop.f32.mrb[0].mxu0
    %v1012 = vadd.f32 %v870, %v1011
    %v1013 = vpop.f32.mrb[0].mxu0
    %1014 = vmatprep.mubr.f32.mxu0 %v800
    %1015 = vmatmul.mubr.f32.gmra.mrb[0].mxu0 %v799
    %v1016 = vpop.f32.mrb[0].mxu0
    %v1017 = vadd.f32 %v870, %v1016
    %v1018 = vpop.f32.mrb[0].mxu0
    %1019 = vmatprep.mubr.f32.mxu0 %v803
    %1020 = vmatmul.mubr.f32.gmra.mrb[0].mxu0 %v802
    %v1021 = vpop.f32.mrb[0].mxu0
    %v1022 = vadd.f32 %v870, %v1021
    %v1023 = vpop.f32.mrb[0].mxu0
    %1024 = vmatprep.mubr.f32.mxu0 %v806
    %1025 = vmatmul.mubr.f32.gmra.mrb[0].mxu0 %v805
    %v1026 = vpop.f32.mrb[0].mxu0
    %v1027 = vadd.f32 %v870, %v1026
    %v1028 = vpop.f32.mrb[0].mxu0
    %1029 = vmatprep.mubr.f32.mxu0 %v809
    %1030 = vmatmul.mubr.f32.gmra.mrb[0].mxu0 %v808
    %v1031 = vpop.f32.mrb[0].mxu0
    %v1032 = vadd.f32 %v870, %v1031
    %v1033 = vpop.f32.mrb[0].mxu0
    %1034 = vmatprep.mubr.f32.mxu0 %v812
    %1035 = vmatmul.mubr.f32.gmra.mrb[0].mxu0 %v811
    %v1036 = vpop.f32.mrb[0].mxu0
    %v1037 = vadd.f32 %v870, %v1036
    %v1038 = vpop.f32.mrb[0].mxu0
    %1039 = vmatprep.mubr.f32.mxu0 %v815
    %1040 = vmatmul.mubr.f32.gmra.mrb[0].mxu0 %v814
    %v1041 = vpop.f32.mrb[0].mxu0
    %v1042 = vadd.f32 %v870, %v1041
    %v1043 = vpop.f32.mrb[0].mxu0
    %1044 = vmatprep.mubr.f32.mxu0 %v818
    %1045 = vmatmul.mubr.f32.gmra.mrb[0].mxu0 %v817
    %v1046 = vpop.f32.mrb[0].mxu0
    %v1047 = vadd.f32 %v870, %v1046
    %v1048 = vpop.f32.mrb[0].mxu0
    %1049 = vmatprep.mubr.f32.mxu0 %v821
    %1050 = vmatmul.mubr.f32.gmra.mrb[0].mxu0 %v820
    %v1051 = vpop.f32.mrb[0].mxu0
    %v1052 = vadd.f32 %v870, %v1051
    %v1053 = vpop.f32.mrb[0].mxu0
    %1054 = vmatprep.mubr.f32.mxu0 %v824
    %1055 = vmatmul.mubr.f32.gmra.mrb[0].mxu0 %v823
    %v1056 = vpop.f32.mrb[0].mxu0
    %v1057 = vadd.f32 %v870, %v1056
    %v1058 = vpop.f32.mrb[0].mxu0
    %1059 = vmatprep.mubr.f32.mxu0 %v827
    %1060 = vmatmul.mubr.f32.gmra.mrb[0].mxu0 %v826
    %v1061 = vpop.f32.mrb[0].mxu0
    %v1062 = vadd.f32 %v870, %v1061
    %v1063 = vpop.f32.mrb[0].mxu0
    %1064 = vdwg.mxu0
    %1065 = vmatprep.subr.mxu0 0.0
    %1066 = vmatpush1.msra.mxu0 %v861
    %1067 = vmatprep.subr.mxu0 0.0
    %1068 = vmatpush1.msra.mxu0 %v862
    %1069 = vmatprep.subr.mxu0 0.0
    %1070 = vmatpush1.msra.mxu0 %v863
    %1071 = vmatprep.subr.mxu0 0.0
    %1072 = vmatpush1.msra.mxu0 %v864
    %1073 = vmatprep.subr.mxu0 0.0
    %1074 = vmatpush1.msra.mxu0 0.0
    %1075 = vmatprep.subr.mxu0 0.0
    %1076 = vmatpush1.msra.mxu0 0.0
    %1077 = vmatprep.subr.mxu0 0.0
    %1078 = vmatpush1.msra.mxu0 0.0
    %1079 = vmatprep.subr.mxu0 0.0
    %1080 = vmatpush1.msra.mxu0 0.0
    %1081 = vmatprep.subr.mxu0 0.0
    %1082 = vmatpush1.msra.mxu0 0.0
    %1083 = vmatprep.subr.mxu0 0.0
    %1084 = vmatpush1.msra.mxu0 0.0
    %1085 = vmatprep.subr.mxu0 0.0
    %1086 = vmatpush1.msra.mxu0 0.0
    %1087 = vmatprep.subr.mxu0 0.0
    %1088 = vmatpush1.msra.mxu0 0.0
    %1089 = vmatprep.subr.mxu0 0.0
    %1090 = vmatpush1.msra.mxu0 0.0
    %1091 = vmatprep.subr.mxu0 0.0
    %1092 = vmatpush1.msra.mxu0 0.0
    %1093 = vmatprep.subr.mxu0 0.0
    %1094 = vmatpush1.msra.mxu0 0.0
    %1095 = vmatprep.subr.mxu0 0.0
    %1096 = vmatpush1.msra.mxu0 0.0
    %1097 = vmatprep.subr.mxu0 0.0
    %1098 = vmatpush1.msra.mxu0 0.0
    %1099 = vmatprep.subr.mxu0 0.0
    %1100 = vmatpush1.msra.mxu0 0.0
    %1101 = vmatprep.subr.mxu0 0.0
    %1102 = vmatpush1.msra.mxu0 0.0
    %1103 = vmatprep.subr.mxu0 0.0
    %1104 = vmatpush1.msra.mxu0 0.0
    %1105 = vmatprep.subr.mxu0 0.0
    %1106 = vmatpush1.msra.mxu0 0.0
    %1107 = vmatprep.subr.mxu0 0.0
    %1108 = vmatpush1.msra.mxu0 0.0
    %1109 = vmatprep.subr.mxu0 0.0
    %1110 = vmatpush1.msra.mxu0 0.0
    %1111 = vmatprep.subr.mxu0 0.0
    %1112 = vmatpush1.msra.mxu0 0.0
    %1113 = vmatprep.subr.mxu0 0.0
    %1114 = vmatpush1.msra.mxu0 0.0
    %1115 = vmatprep.subr.mxu0 0.0
    %1116 = vmatpush1.msra.mxu0 0.0
    %1117 = vmatprep.subr.mxu0 0.0
    %1118 = vmatpush1.msra.mxu0 0.0
    %1119 = vmatprep.subr.mxu0 0.0
    %1120 = vmatpush1.msra.mxu0 0.0
    %1121 = vmatprep.subr.mxu0 0.0
    %1122 = vmatpush1.msra.mxu0 0.0
    %1123 = vmatprep.subr.mxu0 0.0
    %1124 = vmatpush1.msra.mxu0 0.0
    %1125 = vmatprep.subr.mxu0 0.0
    %1126 = vmatpush1.msra.mxu0 0.0
    %1127 = vmatprep.subr.mxu0 0.0
    %1128 = vmatpush1.msra.mxu0 0.0
    %1129 = vmatprep.mubr.f32.mxu0 0.0
    %1130 = vmatmul.mubr.f32.gmra.mrb[0].mxu0 %v873
    %v1131 = vpop.f32.mrb[0].mxu0
    %v1132 = vadd.f32 %v987, %v1131
    %v1133 = vpop.f32.mrb[0].mxu0
    %1134 = vmatprep.mubr.f32.mxu0 0.0
    %1135 = vmatmul.mubr.f32.gmra.mrb[0].mxu0 %v876
    %v1136 = vpop.f32.mrb[0].mxu0
    %v1137 = vadd.f32 %v992, %v1136
    %v1138 = vpop.f32.mrb[0].mxu0
    %1139 = vmatprep.mubr.f32.mxu0 0.0
    %1140 = vmatmul.mubr.f32.gmra.mrb[0].mxu0 %v879
    %v1141 = vpop.f32.mrb[0].mxu0
    %v1142 = vadd.f32 %v997, %v1141
    %v1143 = vpop.f32.mrb[0].mxu0
    %1144 = vmatprep.mubr.f32.mxu0 0.0
    %1145 = vmatmul.mubr.f32.gmra.mrb[0].mxu0 %v882
    %v1146 = vpop.f32.mrb[0].mxu0
    %v1147 = vadd.f32 %v1002, %v1146
    %v1148 = vpop.f32.mrb[0].mxu0
    %1149 = vmatprep.mubr.f32.mxu0 0.0
    %1150 = vmatmul.mubr.f32.gmra.mrb[0].mxu0 %v885
    %v1151 = vpop.f32.mrb[0].mxu0
    %v1152 = vadd.f32 %v1007, %v1151
    %v1153 = vpop.f32.mrb[0].mxu0
    %1154 = vmatprep.mubr.f32.mxu0 0.0
    %1155 = vmatmul.mubr.f32.gmra.mrb[0].mxu0 %v888
    %v1156 = vpop.f32.mrb[0].mxu0
    %v1157 = vadd.f32 %v1012, %v1156
    %v1158 = vpop.f32.mrb[0].mxu0
    %1159 = vmatprep.mubr.f32.mxu0 0.0
    %1160 = vmatmul.mubr.f32.gmra.mrb[0].mxu0 %v891
    %v1161 = vpop.f32.mrb[0].mxu0
    %v1162 = vadd.f32 %v1017, %v1161
    %v1163 = vpop.f32.mrb[0].mxu0
    %1164 = vmatprep.mubr.f32.mxu0 0.0
    %1165 = vmatmul.mubr.f32.gmra.mrb[0].mxu0 %v894
    %v1166 = vpop.f32.mrb[0].mxu0
    %v1167 = vadd.f32 %v1022, %v1166
    %v1168 = vpop.f32.mrb[0].mxu0
    %1169 = vmatprep.mubr.f32.mxu0 0.0
    %1170 = vmatmul.mubr.f32.gmra.mrb[0].mxu0 %v897
    %v1171 = vpop.f32.mrb[0].mxu0
    %v1172 = vadd.f32 %v1027, %v1171
    %v1173 = vpop.f32.mrb[0].mxu0
    %1174 = vmatprep.mubr.f32.mxu0 0.0
    %1175 = vmatmul.mubr.f32.gmra.mrb[0].mxu0 %v900
    %v1176 = vpop.f32.mrb[0].mxu0
    %v1177 = vadd.f32 %v1032, %v1176
    %v1178 = vpop.f32.mrb[0].mxu0
    %1179 = vmatprep.mubr.f32.mxu0 0.0
    %1180 = vmatmul.mubr.f32.gmra.mrb[0].mxu0 %v903
    %v1181 = vpop.f32.mrb[0].mxu0
    %v1182 = vadd.f32 %v1037, %v1181
    %v1183 = vpop.f32.mrb[0].mxu0
    %1184 = vmatprep.mubr.f32.mxu0 0.0
    %1185 = vmatmul.mubr.f32.gmra.mrb[0].mxu0 %v906
    %v1186 = vpop.f32.mrb[0].mxu0
    %v1187 = vadd.f32 %v1042, %v1186
    %v1188 = vpop.f32.mrb[0].mxu0
    %1189 = vmatprep.mubr.f32.mxu0 0.0
    %1190 = vmatmul.mubr.f32.gmra.mrb[0].mxu0 %v909
    %v1191 = vpop.f32.mrb[0].mxu0
    %v1192 = vadd.f32 %v1047, %v1191
    %v1193 = vpop.f32.mrb[0].mxu0
    %1194 = vmatprep.mubr.f32.mxu0 0.0
    %1195 = vmatmul.mubr.f32.gmra.mrb[0].mxu0 %v912
    %v1196 = vpop.f32.mrb[0].mxu0
    %v1197 = vadd.f32 %v1052, %v1196
    %v1198 = vpop.f32.mrb[0].mxu0
    %1199 = vmatprep.mubr.f32.mxu0 0.0
    %1200 = vmatmul.mubr.f32.gmra.mrb[0].mxu0 %v915
    %v1201 = vpop.f32.mrb[0].mxu0
    %v1202 = vadd.f32 %v1057, %v1201
    %v1203 = vpop.f32.mrb[0].mxu0
    %1204 = vmatprep.mubr.f32.mxu0 0.0
    %1205 = vmatmul.mubr.f32.gmra.mrb[0].mxu0 %v918
    %v1206 = vpop.f32.mrb[0].mxu0
    %v1207 = vadd.f32 %v1062, %v1206
    %v1208 = vpop.f32.mrb[0].mxu0
    %1209 = vdwg.mxu0
    %v1210 = vmax.f32 %v1132, 0.0
    %v1211 = vmax.f32 %v1137, 0.0
    %v1212 = vmax.f32 %v1142, 0.0
    %v1213 = vmax.f32 %v1147, 0.0
    %v1214 = vmax.f32 %v1152, 0.0
    %v1215 = vmax.f32 %v1157, 0.0
    %v1216 = vmax.f32 %v1162, 0.0
    %v1217 = vmax.f32 %v1167, 0.0
    %v1218 = vmax.f32 %v1172, 0.0
    %v1219 = vmax.f32 %v1177, 0.0
    %v1220 = vmax.f32 %v1182, 0.0
    %v1221 = vmax.f32 %v1187, 0.0
    %v1222 = vmax.f32 %v1192, 0.0
    %v1223 = vmax.f32 %v1197, 0.0
    %v1224 = vmax.f32 %v1202, 0.0
    %v1225 = vmax.f32 %v1207, 0.0
    %v1226 = vld [vmem:[%s3] sm:$0xff]
    %v1227 = vld [vmem:[%s3 + $0x8] sm:$0xff]
    %v1228 = vld [vmem:[%s3 + $0x10] sm:$0xff]
    %v1229 = vld [vmem:[%s3 + $0x18] sm:$0xff]
    %v1230 = vld [vmem:[%s6] sm:$0x1]
    %v1232 = vlaneseq
    %v1233 = vshrl.u32 %v1232, 7
    %v1234 = vsub.s32 0, %v1233
    %v1235 = vrot.slane %v1230, %v1234
    %v1238 = vsel %vm634, %v1210, 0
    %v1241 = vsel %vm634, %v1211, 0
    %v1244 = vsel %vm634, %v1212, 0
    %v1247 = vsel %vm634, %v1213, 0
    %v1250 = vsel %vm634, %v1214, 0
    %v1253 = vsel %vm634, %v1215, 0
    %v1256 = vsel %vm634, %v1216, 0
    %v1259 = vsel %vm634, %v1217, 0
    %v1262 = vsel %vm634, %v1218, 0
    %v1265 = vsel %vm634, %v1219, 0
    %v1268 = vsel %vm634, %v1220, 0
    %v1271 = vsel %vm634, %v1221, 0
    %v1274 = vsel %vm634, %v1222, 0
    %v1277 = vsel %vm634, %v1223, 0
    %v1280 = vsel %vm634, %v1224, 0
    %v1283 = vsel %vm634, %v1225, 0
    %1285 = vmatprep.subr.mxu0 0.0
    %1286 = vmatpush1.msra.mxu0 %v1226
    %1287 = vmatprep.subr.mxu0 0.0
    %1288 = vmatpush1.msra.mxu0 %v1227
    %1289 = vmatprep.subr.mxu0 0.0
    %1290 = vmatpush1.msra.mxu0 %v1228
    %1291 = vmatprep.subr.mxu0 0.0
    %1292 = vmatpush1.msra.mxu0 %v1229
    %1293 = vmatprep.subr.mxu0 0.0
    %1294 = vmatpush1.msra.mxu0 0.0
    %1295 = vmatprep.subr.mxu0 0.0
    %1296 = vmatpush1.msra.mxu0 0.0
    %1297 = vmatprep.subr.mxu0 0.0
    %1298 = vmatpush1.msra.mxu0 0.0
    %1299 = vmatprep.subr.mxu0 0.0
    %1300 = vmatpush1.msra.mxu0 0.0
    %1301 = vmatprep.subr.mxu0 0.0
    %1302 = vmatpush1.msra.mxu0 0.0
    %1303 = vmatprep.subr.mxu0 0.0
    %1304 = vmatpush1.msra.mxu0 0.0
    %1305 = vmatprep.subr.mxu0 0.0
    %1306 = vmatpush1.msra.mxu0 0.0
    %1307 = vmatprep.subr.mxu0 0.0
    %1308 = vmatpush1.msra.mxu0 0.0
    %1309 = vmatprep.subr.mxu0 0.0
    %1310 = vmatpush1.msra.mxu0 0.0
    %1311 = vmatprep.subr.mxu0 0.0
    %1312 = vmatpush1.msra.mxu0 0.0
    %1313 = vmatprep.subr.mxu0 0.0
    %1314 = vmatpush1.msra.mxu0 0.0
    %1315 = vmatprep.subr.mxu0 0.0
    %1316 = vmatpush1.msra.mxu0 0.0
    %1317 = vmatprep.subr.mxu0 0.0
    %1318 = vmatpush1.msra.mxu0 0.0
    %1319 = vmatprep.subr.mxu0 0.0
    %1320 = vmatpush1.msra.mxu0 0.0
    %1321 = vmatprep.subr.mxu0 0.0
    %1322 = vmatpush1.msra.mxu0 0.0
    %1323 = vmatprep.subr.mxu0 0.0
    %1324 = vmatpush1.msra.mxu0 0.0
    %1325 = vmatprep.subr.mxu0 0.0
    %1326 = vmatpush1.msra.mxu0 0.0
    %1327 = vmatprep.subr.mxu0 0.0
    %1328 = vmatpush1.msra.mxu0 0.0
    %1329 = vmatprep.subr.mxu0 0.0
    %1330 = vmatpush1.msra.mxu0 0.0
    %1331 = vmatprep.subr.mxu0 0.0
    %1332 = vmatpush1.msra.mxu0 0.0
    %1333 = vmatprep.subr.mxu0 0.0
    %1334 = vmatpush1.msra.mxu0 0.0
    %1335 = vmatprep.subr.mxu0 0.0
    %1336 = vmatpush1.msra.mxu0 0.0
    %1337 = vmatprep.subr.mxu0 0.0
    %1338 = vmatpush1.msra.mxu0 0.0
    %1339 = vmatprep.subr.mxu0 0.0
    %1340 = vmatpush1.msra.mxu0 0.0
    %1341 = vmatprep.subr.mxu0 0.0
    %1342 = vmatpush1.msra.mxu0 0.0
    %1343 = vmatprep.subr.mxu0 0.0
    %1344 = vmatpush1.msra.mxu0 0.0
    %1345 = vmatprep.subr.mxu0 0.0
    %1346 = vmatpush1.msra.mxu0 0.0
    %1347 = vmatprep.subr.mxu0 0.0
    %1348 = vmatpush1.msra.mxu0 0.0
    %1349 = vmatprep.mubr.f32.mxu0 0.0
    %1350 = vmatmul.mubr.f32.gmra.mrb[0].mxu0 %v1238
    %v1351 = vpop.f32.mrb[0].mxu0
    %v1352 = vadd.f32 %v1235, %v1351
    %v1353 = vpop.f32.mrb[0].mxu0
    %1354 = vmatprep.mubr.f32.mxu0 0.0
    %1355 = vmatmul.mubr.f32.gmra.mrb[0].mxu0 %v1241
    %v1356 = vpop.f32.mrb[0].mxu0
    %v1357 = vadd.f32 %v1235, %v1356
    %v1358 = vpop.f32.mrb[0].mxu0
    %1359 = vmatprep.mubr.f32.mxu0 0.0
    %1360 = vmatmul.mubr.f32.gmra.mrb[0].mxu0 %v1244
    %v1361 = vpop.f32.mrb[0].mxu0
    %v1362 = vadd.f32 %v1235, %v1361
    %v1363 = vpop.f32.mrb[0].mxu0
    %1364 = vmatprep.mubr.f32.mxu0 0.0
    %1365 = vmatmul.mubr.f32.gmra.mrb[0].mxu0 %v1247
    %v1366 = vpop.f32.mrb[0].mxu0
    %v1367 = vadd.f32 %v1235, %v1366
    %v1368 = vpop.f32.mrb[0].mxu0
    %1369 = vmatprep.mubr.f32.mxu0 0.0
    %1370 = vmatmul.mubr.f32.gmra.mrb[0].mxu0 %v1250
    %v1371 = vpop.f32.mrb[0].mxu0
    %v1372 = vadd.f32 %v1235, %v1371
    %v1373 = vpop.f32.mrb[0].mxu0
    %1374 = vmatprep.mubr.f32.mxu0 0.0
    %1375 = vmatmul.mubr.f32.gmra.mrb[0].mxu0 %v1253
    %v1376 = vpop.f32.mrb[0].mxu0
    %v1377 = vadd.f32 %v1235, %v1376
    %v1378 = vpop.f32.mrb[0].mxu0
    %1379 = vmatprep.mubr.f32.mxu0 0.0
    %1380 = vmatmul.mubr.f32.gmra.mrb[0].mxu0 %v1256
    %v1381 = vpop.f32.mrb[0].mxu0
    %v1382 = vadd.f32 %v1235, %v1381
    %v1383 = vpop.f32.mrb[0].mxu0
    %1384 = vmatprep.mubr.f32.mxu0 0.0
    %1385 = vmatmul.mubr.f32.gmra.mrb[0].mxu0 %v1259
    %v1386 = vpop.f32.mrb[0].mxu0
    %v1387 = vadd.f32 %v1235, %v1386
    %v1388 = vpop.f32.mrb[0].mxu0
    %1389 = vmatprep.mubr.f32.mxu0 0.0
    %1390 = vmatmul.mubr.f32.gmra.mrb[0].mxu0 %v1262
    %v1391 = vpop.f32.mrb[0].mxu0
    %v1392 = vadd.f32 %v1235, %v1391
    %v1393 = vpop.f32.mrb[0].mxu0
    %1394 = vmatprep.mubr.f32.mxu0 0.0
    %1395 = vmatmul.mubr.f32.gmra.mrb[0].mxu0 %v1265
    %v1396 = vpop.f32.mrb[0].mxu0
    %v1397 = vadd.f32 %v1235, %v1396
    %v1398 = vpop.f32.mrb[0].mxu0
    %1399 = vmatprep.mubr.f32.mxu0 0.0
    %1400 = vmatmul.mubr.f32.gmra.mrb[0].mxu0 %v1268
    %v1401 = vpop.f32.mrb[0].mxu0
    %v1402 = vadd.f32 %v1235, %v1401
    %v1403 = vpop.f32.mrb[0].mxu0
    %1404 = vmatprep.mubr.f32.mxu0 0.0
    %1405 = vmatmul.mubr.f32.gmra.mrb[0].mxu0 %v1271
    %v1406 = vpop.f32.mrb[0].mxu0
    %v1407 = vadd.f32 %v1235, %v1406
    %v1408 = vpop.f32.mrb[0].mxu0
    %1409 = vmatprep.mubr.f32.mxu0 0.0
    %1410 = vmatmul.mubr.f32.gmra.mrb[0].mxu0 %v1274
    %v1411 = vpop.f32.mrb[0].mxu0
    %v1412 = vadd.f32 %v1235, %v1411
    %v1413 = vpop.f32.mrb[0].mxu0
    %1414 = vmatprep.mubr.f32.mxu0 0.0
    %1415 = vmatmul.mubr.f32.gmra.mrb[0].mxu0 %v1277
    %v1416 = vpop.f32.mrb[0].mxu0
    %v1417 = vadd.f32 %v1235, %v1416
    %v1418 = vpop.f32.mrb[0].mxu0
    %1419 = vmatprep.mubr.f32.mxu0 0.0
    %1420 = vmatmul.mubr.f32.gmra.mrb[0].mxu0 %v1280
    %v1421 = vpop.f32.mrb[0].mxu0
    %v1422 = vadd.f32 %v1235, %v1421
    %v1423 = vpop.f32.mrb[0].mxu0
    %1424 = vmatprep.mubr.f32.mxu0 0.0
    %1425 = vmatmul.mubr.f32.gmra.mrb[0].mxu0 %v1283
    %v1426 = vpop.f32.mrb[0].mxu0
    %v1427 = vadd.f32 %v1235, %v1426
    %v1428 = vpop.f32.mrb[0].mxu0
    %1429 = vdwg.mxu0
    %v1430 = vadd.f32 %v1352, %v30
    %v1431 = vadd.f32 %v1357, %v31
    %v1432 = vadd.f32 %v1362, %v32
    %v1433 = vadd.f32 %v1367, %v33
    %v1434 = vadd.f32 %v1372, %v34
    %v1435 = vadd.f32 %v1377, %v35
    %v1436 = vadd.f32 %v1382, %v36
    %v1437 = vadd.f32 %v1387, %v37
    %v1438 = vadd.f32 %v1392, %v38
    %v1439 = vadd.f32 %v1397, %v39
    %v1440 = vadd.f32 %v1402, %v40
    %v1441 = vadd.f32 %v1407, %v41
    %v1442 = vadd.f32 %v1412, %v42
    %v1443 = vadd.f32 %v1417, %v43
    %v1444 = vadd.f32 %v1422, %v44
    %v1445 = vadd.f32 %v1427, %v45
    %v1446 = vmax.f32 %v1430, 0.0
    %v1447 = vmax.f32 %v1431, 0.0
    %v1448 = vmax.f32 %v1432, 0.0
    %v1449 = vmax.f32 %v1433, 0.0
    %v1450 = vmax.f32 %v1434, 0.0
    %v1451 = vmax.f32 %v1435, 0.0
    %v1452 = vmax.f32 %v1436, 0.0
    %v1453 = vmax.f32 %v1437, 0.0
    %v1454 = vmax.f32 %v1438, 0.0
    %v1455 = vmax.f32 %v1439, 0.0
    %v1456 = vmax.f32 %v1440, 0.0
    %v1457 = vmax.f32 %v1441, 0.0
    %v1458 = vmax.f32 %v1442, 0.0
    %v1459 = vmax.f32 %v1443, 0.0
    %v1460 = vmax.f32 %v1444, 0.0
    %v1461 = vmax.f32 %v1445, 0.0
    %1462 = vst [vmem:[#allocation2] sm:$0xff] %v1446
    %1463 = vst [vmem:[#allocation2 + $0x8] sm:$0xff] %v1447
    %1464 = vst [vmem:[#allocation2 + $0x10] sm:$0xff] %v1448
    %1465 = vst [vmem:[#allocation2 + $0x18] sm:$0xff] %v1449
    %1466 = vst [vmem:[#allocation2 + $0x20] sm:$0xff] %v1450
    %1467 = vst [vmem:[#allocation2 + $0x28] sm:$0xff] %v1451
    %1468 = vst [vmem:[#allocation2 + $0x30] sm:$0xff] %v1452
    %1469 = vst [vmem:[#allocation2 + $0x38] sm:$0xff] %v1453
    %1470 = vst [vmem:[#allocation2 + $0x40] sm:$0xff] %v1454
    %1471 = vst [vmem:[#allocation2 + $0x48] sm:$0xff] %v1455
    %1472 = vst [vmem:[#allocation2 + $0x50] sm:$0xff] %v1456
    %1473 = vst [vmem:[#allocation2 + $0x58] sm:$0xff] %v1457
    %1474 = vst [vmem:[#allocation2 + $0x60] sm:$0xff] %v1458
    %1475 = vst [vmem:[#allocation2 + $0x68] sm:$0xff] %v1459
    %1476 = vst [vmem:[#allocation2 + $0x70] sm:$0xff] %v1460
    %1477 = vst [vmem:[#allocation2 + $0x78] sm:$0xff] %v1461
    // Predicated region
    $region34: #{forward_nhwc.1} parent=1 // pred_check
      _
    $region35: #{forward_nhwc.1} parent=1 // pred_check_branch
      %1479 = sbr.rel (0) target = $region37
    $region36: #{forward_nhwc.1} parent=1 // pred_region
      %s1481 = ssub.s32 2048, 2048
      %1482 = vsyncadd [#allocation3], %s1481
      %s1483 = sshll.u32 [#allocation2], 4
      %s1484 = int_to_ptr.vmem [resolvable:$true] %s1483
      %1489 = dma.vmem_to_hbm [thread:$0]  %s1484, 2048, %s8, [#allocation3], 128, 128, 8
    $region37: #{forward_nhwc.1} parent=1 // pred_fallthru
      _
    // Predicated region
    $region38: #{forward_nhwc.1} parent=1 // pred_check
      _
    $region39: #{forward_nhwc.1} parent=1 // pred_check_branch
      %1491 = sbr.rel (0) target = $region41
    $region40: #{forward_nhwc.1} parent=1 // pred_region
      %1492 = dma.done [#allocation3], 2048
    $region41: #{forward_nhwc.1} parent=1 // pred_fallthru
      _
    %1493 = vsyncpa [#allocation3], 1

</llo_original>
